<compile_context>
chip_gen: v6e
topology: v6e:2x2x1
jax: 0.10.0
libtpu: 0.0.40
codegen_flags: <defaults>
</compile_context>

<pallas_src>
import functools

import jax
import jax.numpy as jnp
import numpy as np
from jax import lax
from jax.experimental import pallas as pl
from jax.experimental.pallas import tpu as pltpu


def _round_up(a, b):
    return (a + b - 1) // b * b


# ---------------------------------------------------------------------------
# Fused CBAM kernel: one grid step == Bt batch elements, everything in VMEM.
# ---------------------------------------------------------------------------
def cbam_kernel(x_ref, w1t_ref, b1_ref, w2t_ref, b2_ref, wc_ref,
                o_ref, pad_ref, *, Bt, C, HW, HWp, W, OFF):
    K = 7
    xf = x_ref[...].astype(jnp.float32)                     # (Bt, C, HWp)

    # ---------------- channel attention ----------------
    avg = jnp.sum(xf, axis=2) * (1.0 / HW)                  # (Bt, C)  (zero pad lanes are inert)
    if HWp != HW:
        lane = lax.broadcasted_iota(jnp.int32, (1, 1, HWp), 2)
        xmax_in = jnp.where(lane < HW, xf, jnp.finfo(jnp.float32).min)
    else:
        xmax_in = xf
    mx = jnp.max(xmax_in, axis=2)                           # (Bt, C)

    # Shared MLP, batched over the whole step: rows [avg(0..Bt), max(0..Bt)].
    pools = jnp.concatenate([avg, mx], axis=0)              # (2*Bt, C)
    h = jnp.dot(pools, w1t_ref[...], preferred_element_type=jnp.float32) + b1_ref[...]
    h = jnp.maximum(h, 0.0)                                 # (2*Bt, Cr)
    att2 = jnp.dot(h, w2t_ref[...], preferred_element_type=jnp.float32) + b2_ref[...]
    att = att2[:Bt, :] + att2[Bt:, :]                       # == mlp(avg) + mlp(max), (Bt, C)
    y = xf * jax.nn.sigmoid(att)[:, :, None]                # (Bt, C, HWp)

    # ---------------- spatial attention ----------------
    pmax = jnp.max(y, axis=1)                               # (Bt, HWp) channel max
    pmean = jnp.sum(y, axis=1) * (1.0 / C)                  # (Bt, HWp) channel mean
    # (padded lanes of y are 0, so padded lanes of pmax/pmean are exactly 0)

    # Zero-padded flattened pooled maps, built in registers and stored with a
    # single aligned full-width store per channel (no separate zero pass, no
    # cross-step scratch state -> megacore-safe).
    zpad = jnp.zeros((Bt, OFF), jnp.float32)
    pad_ref[0] = jnp.concatenate([zpad, pmax, zpad], axis=-1)   # (Bt, PADLEN)
    pad_ref[1] = jnp.concatenate([zpad, pmean, zpad], axis=-1)
    p0 = pad_ref[0]                                         # max-pool channel (wc ch 0)
    p1 = pad_ref[1]                                         # mean-pool channel (wc ch 1)

    # 7x7 "same" conv as an unrolled sum of statically shifted windows.
    # Vertical padding comes from the zero slack around [OFF, OFF+HWp);
    # horizontal padding from the per-column-offset mask (depends only on dc).
    col = lax.broadcasted_iota(jnp.int32, (1, HWp), 1) % W
    conv = jnp.zeros((Bt, HWp), jnp.float32)
    for kj in range(K):
        dc = kj - 3
        inner = jnp.zeros((Bt, HWp), jnp.float32)           # per-dc partial sum
        for ki in range(K):
            dr = ki - 3
            start = OFF + dr * W + dc
            inner = inner + wc_ref[ki * K + kj] * p0[:, start:start + HWp] \
                          + wc_ref[K * K + ki * K + kj] * p1[:, start:start + HWp]
        valid = jnp.logical_and(col + dc >= 0, col + dc < W)
        conv = conv + jnp.where(valid, inner, 0.0)

    scale_s = jax.nn.sigmoid(conv)                          # (Bt, HWp)
    o_ref[...] = (y * scale_s[:, None, :]).astype(o_ref.dtype)


# ---------------------------------------------------------------------------
# Wrapper
# ---------------------------------------------------------------------------
def cbam_pallas(x, w1, b1, w2, b2, wc):
    """x: (B, C, H, W). Returns (B, C, H, W) with the same dtype as x."""
    B, C, H, W = x.shape
    Cr = w1.shape[0]
    HW = H * W
    HWp = _round_up(HW, 128)                  # lane-dense last dim (unmasked vst)
    OFF = _round_up(3 * W + 3, 128)           # zero slack covering +-(3*W + 3)
    PADLEN = HWp + 2 * OFF

    # Batch tile: target ~1 MiB input tiles (measured Pallas sweet spot).  Keep
    # >=2 grid steps (v7x: 2 TensorCores) only if tiles stay >= ~512 KiB.
    itemsize = np.dtype(x.dtype).itemsize
    per_b = C * HWp * itemsize
    Bt = int(max(1, min(B, (1 << 20) // max(per_b, 1))))
    if Bt >= B and B > 1:
        half = (B + 1) // 2
        if half * per_b >= (512 << 10):
            Bt = half
    nsteps = -(-B // Bt)
    Bp = nsteps * Bt

    x3 = x.reshape(B, C, HW)                  # contiguous merge -> free in XLA
    if HWp != HW:
        x3 = jnp.pad(x3, ((0, 0), (0, 0), (0, HWp - HW)))
    if Bp != B:
        x3 = jnp.pad(x3, ((0, Bp - B), (0, 0), (0, 0)))

    w1t = jnp.asarray(w1, jnp.float32).T      # (C, Cr)
    w2t = jnp.asarray(w2, jnp.float32).T      # (Cr, C)
    b1r = jnp.asarray(b1, jnp.float32).reshape(1, Cr)
    b2r = jnp.asarray(b2, jnp.float32).reshape(1, C)
    wcf = jnp.asarray(wc, jnp.float32).reshape(-1)   # (2*7*7,) = [max-ch, mean-ch]

    kernel = functools.partial(cbam_kernel, Bt=Bt, C=C, HW=HW, HWp=HWp, W=W, OFF=OFF)

    cost = pl.CostEstimate(
        flops=int(Bp * (8 * C * Cr + 196 * HW + 8 * C * HW)),
        transcendentals=int(Bp * (C + HW)),
        bytes_accessed=int(2 * Bp * C * HWp * itemsize
                           + (2 * C * Cr + C + Cr + 98) * 4),
    )

    out3 = pl.pallas_call(
        kernel,
        out_shape=jax.ShapeDtypeStruct((Bp, C, HWp), x.dtype),
        grid=(nsteps,),
        in_specs=[
            pl.BlockSpec((Bt, C, HWp), lambda b: (b, 0, 0)),
            pl.BlockSpec((C, Cr), lambda b: (0, 0)),
            pl.BlockSpec((1, Cr), lambda b: (0, 0)),
            pl.BlockSpec((Cr, C), lambda b: (0, 0)),
            pl.BlockSpec((1, C), lambda b: (0, 0)),
            pl.BlockSpec(memory_space=pltpu.MemorySpace.SMEM),
        ],
        out_specs=pl.BlockSpec((Bt, C, HWp), lambda b: (b, 0, 0)),
        scratch_shapes=[pltpu.VMEM((2, Bt, PADLEN), jnp.float32)],
        compiler_params=pltpu.CompilerParams(
            dimension_semantics=("parallel",),
            vmem_limit_bytes=32 * 1024 * 1024,
        ),
        cost_estimate=cost,
    )(x3, w1t, b1r, w2t, b2r, wcf)

    return out3[:B, :, :HW].reshape(B, C, H, W)


# ---------------------------------------------------------------------------
# Pure-JAX reference (mirrors the PyTorch forward exactly; f32)
# ---------------------------------------------------------------------------
def cbam_reference(x, w1, b1, w2, b2, wc):
    B, C, H, W = x.shape
    xf = x.reshape(B, C, H * W)
    avg = xf.mean(-1)
    mx = xf.max(-1)

    def mlp(v):  # nn.Linear: y = v @ W.T + b
        h = jnp.maximum(v @ w1.T + b1, 0.0)
        return h @ w2.T + b2

    scale_c = jax.nn.sigmoid(mlp(avg) + mlp(mx))[:, :, None, None]
    y = x * scale_c

    pool = jnp.stack([y.max(axis=1), y.mean(axis=1)], axis=1)  # (B, 2, H, W)
    conv = lax.conv_general_dilated(
        pool, wc, window_strides=(1, 1), padding=[(3, 3), (3, 3)],
        dimension_numbers=("NCHW", "OIHW", "NCHW"))
    return y * jax.nn.sigmoid(conv)


if __name__ == "__main__":
    B, C, H, W = 2, 16, 16, 16
    reduction_ratio = 8
    Cr = C // reduction_ratio

    key = jax.random.PRNGKey(0)
    k_x, k_w1, k_b1, k_w2, k_b2, k_wc = jax.random.split(key, 6)

    x = jax.random.normal(k_x, (B, C, H, W), dtype=jnp.float32)
    # Deterministic synthetic parameters (shapes follow the PyTorch module).
    w1 = 0.3 * jax.random.normal(k_w1, (Cr, C), dtype=jnp.float32)   # Linear(C -> C/r).weight
    b1 = 0.1 * jax.random.normal(k_b1, (Cr,), dtype=jnp.float32)
    w2 = 0.3 * jax.random.normal(k_w2, (C, Cr), dtype=jnp.float32)   # Linear(C/r -> C).weight
    b2 = 0.1 * jax.random.normal(k_b2, (C,), dtype=jnp.float32)
    wc = 0.1 * jax.random.normal(k_wc, (1, 2, 7, 7), dtype=jnp.float32)  # Conv2d(2,1,7).weight

    out = cbam_pallas(x, w1, b1, w2, b2, wc)
    out = jax.block_until_ready(out)

    ref = cbam_reference(x, w1, b1, w2, b2, wc)
    assert out.shape == (B, C, H, W)
    np.testing.assert_allclose(np.asarray(out), np.asarray(ref), rtol=1e-4, atol=1e-4)

    print("KERNEL_OK")
</pallas_src>

<mosaic_0001>
module attributes {stable_mosaic.version = 11 : i64} {
  func.func @cbam_kernel(%arg0: i32, %arg1: memref<2x16x256xf32, #tpu.memory_space<vmem>>, %arg2: memref<16x2xf32, #tpu.memory_space<vmem>>, %arg3: memref<1x2xf32, #tpu.memory_space<vmem>>, %arg4: memref<2x16xf32, #tpu.memory_space<vmem>>, %arg5: memref<1x16xf32, #tpu.memory_space<vmem>>, %arg6: memref<98xf32, #tpu.memory_space<smem>>, %arg7: memref<2x16x256xf32, #tpu.memory_space<vmem>>, %arg8: memref<2x2x512xf32, #tpu.memory_space<vmem>>) attributes {dimension_semantics = [#tpu.dimension_semantics<parallel>], iteration_bounds = array<i64: 1>, scalar_prefetch = 0 : i64, scratch_operands = 1 : i64, tpu.core_type = #tpu.core_type<tc>, window_params = [{transform_indices = @transform_0, window_bounds = array<i64: 2, 16, 256>}, {pipeline_mode = #tpu.pipeline_mode<synchronous>, transform_indices = @transform_1, window_bounds = array<i64: 16, 2>}, {pipeline_mode = #tpu.pipeline_mode<synchronous>, transform_indices = @transform_2, window_bounds = array<i64: 1, 2>}, {pipeline_mode = #tpu.pipeline_mode<synchronous>, transform_indices = @transform_3, window_bounds = array<i64: 2, 16>}, {pipeline_mode = #tpu.pipeline_mode<synchronous>, transform_indices = @transform_4, window_bounds = array<i64: 1, 16>}, {transform_indices = @transform_5, window_bounds = array<i64: 98>}, {transform_indices = @transform_6, window_bounds = array<i64: 2, 16, 256>}]} {
    %c0 = arith.constant 0 : index
    %c0_0 = arith.constant 0 : index
    %c0_1 = arith.constant 0 : index
    %0 = vector.load %arg1[%c0, %c0_0, %c0_1] : memref<2x16x256xf32, #tpu.memory_space<vmem>>, vector<2x16x256xf32>
    %cst = arith.constant dense<0.000000e+00> : vector<2x16xf32>
    %1 = vector.multi_reduction <add>, %0, %cst [2] : vector<2x16x256xf32> to vector<2x16xf32>
    %cst_2 = arith.constant 3.906250e-03 : f32
    %2 = vector.broadcast %cst_2 : f32 to vector<2x16xf32>
    %3 = arith.mulf %1, %2 : vector<2x16xf32>
    %cst_3 = arith.constant dense<0xFF800000> : vector<2x16xf32>
    %4 = vector.multi_reduction <maximumf>, %0, %cst_3 [2] : vector<2x16x256xf32> to vector<2x16xf32>
    %5 = tpu.concatenate %3, %4 in 0 : vector<2x16xf32>, vector<2x16xf32> -> vector<4x16xf32>
    %c0_4 = arith.constant 0 : index
    %c0_5 = arith.constant 0 : index
    %6 = vector.load %arg2[%c0_4, %c0_5] : memref<16x2xf32, #tpu.memory_space<vmem>>, vector<16x2xf32>
    %cst_6 = arith.constant dense<0.000000e+00> : vector<4x2xf32>
    %7 = tpu.matmul %5, %6, %cst_6 {dimension_numbers = #tpu.dot_dimension_numbers<[1], [0], [0], [1], [0, 0, 1, 1], [], []>} : vector<4x16xf32>, vector<16x2xf32>, vector<4x2xf32> -> vector<4x2xf32>
    %c0_7 = arith.constant 0 : index
    %c0_8 = arith.constant 0 : index
    %8 = vector.load %arg3[%c0_7, %c0_8] : memref<1x2xf32, #tpu.memory_space<vmem>>, vector<1x2xf32>
    %9 = vector.broadcast %8 : vector<1x2xf32> to vector<4x2xf32>
    %10 = arith.addf %7, %9 : vector<4x2xf32>
    %cst_9 = arith.constant 0.000000e+00 : f32
    %11 = vector.broadcast %cst_9 : f32 to vector<4x2xf32>
    %12 = arith.maximumf %10, %11 : vector<4x2xf32>
    %c0_10 = arith.constant 0 : index
    %c0_11 = arith.constant 0 : index
    %13 = vector.load %arg4[%c0_10, %c0_11] : memref<2x16xf32, #tpu.memory_space<vmem>>, vector<2x16xf32>
    %cst_12 = arith.constant dense<0.000000e+00> : vector<4x16xf32>
    %14 = tpu.matmul %12, %13, %cst_12 {dimension_numbers = #tpu.dot_dimension_numbers<[1], [0], [0], [1], [0, 0, 1, 1], [], []>} : vector<4x2xf32>, vector<2x16xf32>, vector<4x16xf32> -> vector<4x16xf32>
    %c0_13 = arith.constant 0 : index
    %c0_14 = arith.constant 0 : index
    %15 = vector.load %arg5[%c0_13, %c0_14] : memref<1x16xf32, #tpu.memory_space<vmem>>, vector<1x16xf32>
    %16 = vector.broadcast %15 : vector<1x16xf32> to vector<4x16xf32>
    %17 = arith.addf %14, %16 : vector<4x16xf32>
    %18 = vector.extract_strided_slice %17 {offsets = [0, 0], sizes = [2, 16], strides = [1, 1]} : vector<4x16xf32> to vector<2x16xf32>
    %19 = vector.extract_strided_slice %17 {offsets = [2, 0], sizes = [2, 16], strides = [1, 1]} : vector<4x16xf32> to vector<2x16xf32>
    %20 = arith.addf %18, %19 : vector<2x16xf32>
    %21 = arith.negf %20 : vector<2x16xf32>
    %22 = math.exp %21 : vector<2x16xf32>
    %cst_15 = arith.constant 1.000000e+00 : f32
    %23 = vector.broadcast %cst_15 : f32 to vector<2x16xf32>
    %24 = arith.addf %23, %22 : vector<2x16xf32>
    %25 = arith.divf %23, %24 : vector<2x16xf32>
    %26 = vector.shape_cast %25 : vector<2x16xf32> to vector<2x16x1xf32>
    %27 = vector.broadcast %26 : vector<2x16x1xf32> to vector<2x16x256xf32>
    %28 = arith.mulf %0, %27 : vector<2x16x256xf32>
    %cst_16 = arith.constant dense<0xFF800000> : vector<2x256xf32>
    %29 = vector.multi_reduction <maximumf>, %28, %cst_16 [1] : vector<2x16x256xf32> to vector<2x256xf32>
    %cst_17 = arith.constant dense<0.000000e+00> : vector<2x256xf32>
    %30 = vector.multi_reduction <add>, %28, %cst_17 [1] : vector<2x16x256xf32> to vector<2x256xf32>
    %cst_18 = arith.constant 6.250000e-02 : f32
    %31 = vector.broadcast %cst_18 : f32 to vector<2x256xf32>
    %32 = arith.mulf %30, %31 : vector<2x256xf32>
    %cst_19 = arith.constant 0.000000e+00 : f32
    %33 = vector.broadcast %cst_19 : f32 to vector<2x128xf32>
    %34 = tpu.concatenate %33, %29, %33 in 1 : vector<2x128xf32>, vector<2x256xf32>, vector<2x128xf32> -> vector<2x512xf32>
    %c0_20 = arith.constant 0 : index
    %c0_21 = arith.constant 0 : index
    %c0_22 = arith.constant 0 : index
    %35 = vector.load %arg8[%c0_20, %c0_21, %c0_22] : memref<2x2x512xf32, #tpu.memory_space<vmem>>, vector<1x2x512xf32>
    %36 = vector.shape_cast %35 : vector<1x2x512xf32> to vector<2x512xf32>
    %37 = vector.shape_cast %34 : vector<2x512xf32> to vector<1x2x512xf32>
    tpu.vector_store %arg8[%c0_20, %c0_21, %c0_22], %37 {strides = array<i32>} : memref<2x2x512xf32, #tpu.memory_space<vmem>>, vector<1x2x512xf32>,
    %38 = tpu.concatenate %33, %32, %33 in 1 : vector<2x128xf32>, vector<2x256xf32>, vector<2x128xf32> -> vector<2x512xf32>
    %c1 = arith.constant 1 : index
    %c0_23 = arith.constant 0 : index
    %c0_24 = arith.constant 0 : index
    %39 = vector.load %arg8[%c1, %c0_23, %c0_24] : memref<2x2x512xf32, #tpu.memory_space<vmem>>, vector<1x2x512xf32>
    %40 = vector.shape_cast %39 : vector<1x2x512xf32> to vector<2x512xf32>
    %41 = vector.shape_cast %38 : vector<2x512xf32> to vector<1x2x512xf32>
    tpu.vector_store %arg8[%c1, %c0_23, %c0_24], %41 {strides = array<i32>} : memref<2x2x512xf32, #tpu.memory_space<vmem>>, vector<1x2x512xf32>,
    %c0_25 = arith.constant 0 : index
    %c0_26 = arith.constant 0 : index
    %c0_27 = arith.constant 0 : index
    %42 = vector.load %arg8[%c0_25, %c0_26, %c0_27] : memref<2x2x512xf32, #tpu.memory_space<vmem>>, vector<1x2x512xf32>
    %43 = vector.shape_cast %42 : vector<1x2x512xf32> to vector<2x512xf32>
    %c1_28 = arith.constant 1 : index
    %c0_29 = arith.constant 0 : index
    %c0_30 = arith.constant 0 : index
    %44 = vector.load %arg8[%c1_28, %c0_29, %c0_30] : memref<2x2x512xf32, #tpu.memory_space<vmem>>, vector<1x2x512xf32>
    %45 = vector.shape_cast %44 : vector<1x2x512xf32> to vector<2x512xf32>
    %46 = tpu.iota {dimensions = array<i32: 1>} : vector<1x256xi32>
    %c16_i32 = arith.constant 16 : i32
    %c0_i32 = arith.constant 0 : i32
    %47 = arith.cmpi eq, %c16_i32, %c0_i32 : i32
    %c1_i32 = arith.constant 1 : i32
    %48 = arith.select %47, %c1_i32, %c16_i32 : i32
    %49 = vector.broadcast %48 : i32 to vector<1x256xi32>
    %50 = arith.remsi %46, %49 : vector<1x256xi32>
    %c0_i32_31 = arith.constant 0 : i32
    %51 = vector.broadcast %c0_i32_31 : i32 to vector<1x256xi32>
    %52 = arith.cmpi ne, %50, %51 : vector<1x256xi32>
    %c0_i32_32 = arith.constant 0 : i32
    %53 = vector.broadcast %c0_i32_32 : i32 to vector<1x256xi32>
    %54 = arith.cmpi slt, %50, %53 : vector<1x256xi32>
    %c0_i32_33 = arith.constant 0 : i32
    %55 = arith.cmpi slt, %48, %c0_i32_33 : i32
    %56 = vector.broadcast %55 : i1 to vector<1x256xi1>
    %57 = vector.broadcast %56 : vector<1x256xi1> to vector<1x256xi1>
    %58 = arith.xori %54, %57 : vector<1x256xi1>
    %59 = arith.andi %58, %52 : vector<1x256xi1>
    %60 = vector.broadcast %48 : i32 to vector<1x256xi32>
    %61 = arith.addi %50, %60 : vector<1x256xi32>
    %62 = arith.select %59, %61, %50 : vector<1x256xi1>, vector<1x256xi32>
    %cst_34 = arith.constant 0.000000e+00 : f32
    %63 = vector.broadcast %cst_34 : f32 to vector<2x256xf32>
    %cst_35 = arith.constant 0.000000e+00 : f32
    %64 = vector.broadcast %cst_35 : f32 to vector<2x256xf32>
    %c0_36 = arith.constant 0 : index
    %65 = memref.load %arg6[%c0_36] : memref<98xf32, #tpu.memory_space<smem>>
    %66 = vector.extract_strided_slice %43 {offsets = [0, 77], sizes = [2, 256], strides = [1, 1]} : vector<2x512xf32> to vector<2x256xf32>
    %67 = vector.broadcast %65 : f32 to vector<2x256xf32>
    %68 = arith.mulf %67, %66 : vector<2x256xf32>
    %69 = arith.addf %64, %68 : vector<2x256xf32>
    %c49 = arith.constant 49 : index
    %70 = memref.load %arg6[%c49] : memref<98xf32, #tpu.memory_space<smem>>
    %71 = vector.extract_strided_slice %45 {offsets = [0, 77], sizes = [2, 256], strides = [1, 1]} : vector<2x512xf32> to vector<2x256xf32>
    %72 = vector.broadcast %70 : f32 to vector<2x256xf32>
    %73 = arith.mulf %72, %71 : vector<2x256xf32>
    %74 = arith.addf %69, %73 : vector<2x256xf32>
    %c7 = arith.constant 7 : index
    %75 = memref.load %arg6[%c7] : memref<98xf32, #tpu.memory_space<smem>>
    %76 = vector.extract_strided_slice %43 {offsets = [0, 93], sizes = [2, 256], strides = [1, 1]} : vector<2x512xf32> to vector<2x256xf32>
    %77 = vector.broadcast %75 : f32 to vector<2x256xf32>
    %78 = arith.mulf %77, %76 : vector<2x256xf32>
    %79 = arith.addf %74, %78 : vector<2x256xf32>
    %c56 = arith.constant 56 : index
    %80 = memref.load %arg6[%c56] : memref<98xf32, #tpu.memory_space<smem>>
    %81 = vector.extract_strided_slice %45 {offsets = [0, 93], sizes = [2, 256], strides = [1, 1]} : vector<2x512xf32> to vector<2x256xf32>
    %82 = vector.broadcast %80 : f32 to vector<2x256xf32>
    %83 = arith.mulf %82, %81 : vector<2x256xf32>
    %84 = arith.addf %79, %83 : vector<2x256xf32>
    %c14 = arith.constant 14 : index
    %85 = memref.load %arg6[%c14] : memref<98xf32, #tpu.memory_space<smem>>
    %86 = vector.extract_strided_slice %43 {offsets = [0, 109], sizes = [2, 256], strides = [1, 1]} : vector<2x512xf32> to vector<2x256xf32>
    %87 = vector.broadcast %85 : f32 to vector<2x256xf32>
    %88 = arith.mulf %87, %86 : vector<2x256xf32>
    %89 = arith.addf %84, %88 : vector<2x256xf32>
    %c63 = arith.constant 63 : index
    %90 = memref.load %arg6[%c63] : memref<98xf32, #tpu.memory_space<smem>>
    %91 = vector.extract_strided_slice %45 {offsets = [0, 109], sizes = [2, 256], strides = [1, 1]} : vector<2x512xf32> to vector<2x256xf32>
    %92 = vector.broadcast %90 : f32 to vector<2x256xf32>
    %93 = arith.mulf %92, %91 : vector<2x256xf32>
    %94 = arith.addf %89, %93 : vector<2x256xf32>
    %c21 = arith.constant 21 : index
    %95 = memref.load %arg6[%c21] : memref<98xf32, #tpu.memory_space<smem>>
    %96 = vector.extract_strided_slice %43 {offsets = [0, 125], sizes = [2, 256], strides = [1, 1]} : vector<2x512xf32> to vector<2x256xf32>
    %97 = vector.broadcast %95 : f32 to vector<2x256xf32>
    %98 = arith.mulf %97, %96 : vector<2x256xf32>
    %99 = arith.addf %94, %98 : vector<2x256xf32>
    %c70 = arith.constant 70 : index
    %100 = memref.load %arg6[%c70] : memref<98xf32, #tpu.memory_space<smem>>
    %101 = vector.extract_strided_slice %45 {offsets = [0, 125], sizes = [2, 256], strides = [1, 1]} : vector<2x512xf32> to vector<2x256xf32>
    %102 = vector.broadcast %100 : f32 to vector<2x256xf32>
    %103 = arith.mulf %102, %101 : vector<2x256xf32>
    %104 = arith.addf %99, %103 : vector<2x256xf32>
    %c28 = arith.constant 28 : index
    %105 = memref.load %arg6[%c28] : memref<98xf32, #tpu.memory_space<smem>>
    %106 = vector.extract_strided_slice %43 {offsets = [0, 141], sizes = [2, 256], strides = [1, 1]} : vector<2x512xf32> to vector<2x256xf32>
    %107 = vector.broadcast %105 : f32 to vector<2x256xf32>
    %108 = arith.mulf %107, %106 : vector<2x256xf32>
    %109 = arith.addf %104, %108 : vector<2x256xf32>
    %c77 = arith.constant 77 : index
    %110 = memref.load %arg6[%c77] : memref<98xf32, #tpu.memory_space<smem>>
    %111 = vector.extract_strided_slice %45 {offsets = [0, 141], sizes = [2, 256], strides = [1, 1]} : vector<2x512xf32> to vector<2x256xf32>
    %112 = vector.broadcast %110 : f32 to vector<2x256xf32>
    %113 = arith.mulf %112, %111 : vector<2x256xf32>
    %114 = arith.addf %109, %113 : vector<2x256xf32>
    %c35 = arith.constant 35 : index
    %115 = memref.load %arg6[%c35] : memref<98xf32, #tpu.memory_space<smem>>
    %116 = vector.extract_strided_slice %43 {offsets = [0, 157], sizes = [2, 256], strides = [1, 1]} : vector<2x512xf32> to vector<2x256xf32>
    %117 = vector.broadcast %115 : f32 to vector<2x256xf32>
    %118 = arith.mulf %117, %116 : vector<2x256xf32>
    %119 = arith.addf %114, %118 : vector<2x256xf32>
    %c84 = arith.constant 84 : index
    %120 = memref.load %arg6[%c84] : memref<98xf32, #tpu.memory_space<smem>>
    %121 = vector.extract_strided_slice %45 {offsets = [0, 157], sizes = [2, 256], strides = [1, 1]} : vector<2x512xf32> to vector<2x256xf32>
    %122 = vector.broadcast %120 : f32 to vector<2x256xf32>
    %123 = arith.mulf %122, %121 : vector<2x256xf32>
    %124 = arith.addf %119, %123 : vector<2x256xf32>
    %c42 = arith.constant 42 : index
    %125 = memref.load %arg6[%c42] : memref<98xf32, #tpu.memory_space<smem>>
    %126 = vector.extract_strided_slice %43 {offsets = [0, 173], sizes = [2, 256], strides = [1, 1]} : vector<2x512xf32> to vector<2x256xf32>
    %127 = vector.broadcast %125 : f32 to vector<2x256xf32>
    %128 = arith.mulf %127, %126 : vector<2x256xf32>
    %129 = arith.addf %124, %128 : vector<2x256xf32>
    %c91 = arith.constant 91 : index
    %130 = memref.load %arg6[%c91] : memref<98xf32, #tpu.memory_space<smem>>
    %131 = vector.extract_strided_slice %45 {offsets = [0, 173], sizes = [2, 256], strides = [1, 1]} : vector<2x512xf32> to vector<2x256xf32>
    %132 = vector.broadcast %130 : f32 to vector<2x256xf32>
    %133 = arith.mulf %132, %131 : vector<2x256xf32>
    %134 = arith.addf %129, %133 : vector<2x256xf32>
    %c-3_i32 = arith.constant -3 : i32
    %135 = vector.broadcast %c-3_i32 : i32 to vector<1x256xi32>
    %136 = arith.addi %62, %135 : vector<1x256xi32>
    %c0_i32_37 = arith.constant 0 : i32
    %137 = vector.broadcast %c0_i32_37 : i32 to vector<1x256xi32>
    %138 = arith.cmpi sge, %136, %137 : vector<1x256xi32>
    %c-3_i32_38 = arith.constant -3 : i32
    %139 = vector.broadcast %c-3_i32_38 : i32 to vector<1x256xi32>
    %140 = arith.addi %62, %139 : vector<1x256xi32>
    %c16_i32_39 = arith.constant 16 : i32
    %141 = vector.broadcast %c16_i32_39 : i32 to vector<1x256xi32>
    %142 = arith.cmpi slt, %140, %141 : vector<1x256xi32>
    %143 = arith.andi %138, %142 : vector<1x256xi1>
    %cst_40 = arith.constant 0.000000e+00 : f32
    %144 = vector.shape_cast %143 : vector<1x256xi1> to vector<1x256xi1>
    %145 = vector.broadcast %144 : vector<1x256xi1> to vector<2x256xi1>
    %146 = vector.broadcast %cst_40 : f32 to vector<2x256xf32>
    %147 = arith.select %145, %134, %146 : vector<2x256xi1>, vector<2x256xf32>
    %148 = arith.addf %63, %147 : vector<2x256xf32>
    %cst_41 = arith.constant 0.000000e+00 : f32
    %149 = vector.broadcast %cst_41 : f32 to vector<2x256xf32>
    %c1_42 = arith.constant 1 : index
    %150 = memref.load %arg6[%c1_42] : memref<98xf32, #tpu.memory_space<smem>>
    %151 = vector.extract_strided_slice %43 {offsets = [0, 78], sizes = [2, 256], strides = [1, 1]} : vector<2x512xf32> to vector<2x256xf32>
    %152 = vector.broadcast %150 : f32 to vector<2x256xf32>
    %153 = arith.mulf %152, %151 : vector<2x256xf32>
    %154 = arith.addf %149, %153 : vector<2x256xf32>
    %c50 = arith.constant 50 : index
    %155 = memref.load %arg6[%c50] : memref<98xf32, #tpu.memory_space<smem>>
    %156 = vector.extract_strided_slice %45 {offsets = [0, 78], sizes = [2, 256], strides = [1, 1]} : vector<2x512xf32> to vector<2x256xf32>
    %157 = vector.broadcast %155 : f32 to vector<2x256xf32>
    %158 = arith.mulf %157, %156 : vector<2x256xf32>
    %159 = arith.addf %154, %158 : vector<2x256xf32>
    %c8 = arith.constant 8 : index
    %160 = memref.load %arg6[%c8] : memref<98xf32, #tpu.memory_space<smem>>
    %161 = vector.extract_strided_slice %43 {offsets = [0, 94], sizes = [2, 256], strides = [1, 1]} : vector<2x512xf32> to vector<2x256xf32>
    %162 = vector.broadcast %160 : f32 to vector<2x256xf32>
    %163 = arith.mulf %162, %161 : vector<2x256xf32>
    %164 = arith.addf %159, %163 : vector<2x256xf32>
    %c57 = arith.constant 57 : index
    %165 = memref.load %arg6[%c57] : memref<98xf32, #tpu.memory_space<smem>>
    %166 = vector.extract_strided_slice %45 {offsets = [0, 94], sizes = [2, 256], strides = [1, 1]} : vector<2x512xf32> to vector<2x256xf32>
    %167 = vector.broadcast %165 : f32 to vector<2x256xf32>
    %168 = arith.mulf %167, %166 : vector<2x256xf32>
    %169 = arith.addf %164, %168 : vector<2x256xf32>
    %c15 = arith.constant 15 : index
    %170 = memref.load %arg6[%c15] : memref<98xf32, #tpu.memory_space<smem>>
    %171 = vector.extract_strided_slice %43 {offsets = [0, 110], sizes = [2, 256], strides = [1, 1]} : vector<2x512xf32> to vector<2x256xf32>
    %172 = vector.broadcast %170 : f32 to vector<2x256xf32>
    %173 = arith.mulf %172, %171 : vector<2x256xf32>
    %174 = arith.addf %169, %173 : vector<2x256xf32>
    %c64 = arith.constant 64 : index
    %175 = memref.load %arg6[%c64] : memref<98xf32, #tpu.memory_space<smem>>
    %176 = vector.extract_strided_slice %45 {offsets = [0, 110], sizes = [2, 256], strides = [1, 1]} : vector<2x512xf32> to vector<2x256xf32>
    %177 = vector.broadcast %175 : f32 to vector<2x256xf32>
    %178 = arith.mulf %177, %176 : vector<2x256xf32>
    %179 = arith.addf %174, %178 : vector<2x256xf32>
    %c22 = arith.constant 22 : index
    %180 = memref.load %arg6[%c22] : memref<98xf32, #tpu.memory_space<smem>>
    %181 = vector.extract_strided_slice %43 {offsets = [0, 126], sizes = [2, 256], strides = [1, 1]} : vector<2x512xf32> to vector<2x256xf32>
    %182 = vector.broadcast %180 : f32 to vector<2x256xf32>
    %183 = arith.mulf %182, %181 : vector<2x256xf32>
    %184 = arith.addf %179, %183 : vector<2x256xf32>
    %c71 = arith.constant 71 : index
    %185 = memref.load %arg6[%c71] : memref<98xf32, #tpu.memory_space<smem>>
    %186 = vector.extract_strided_slice %45 {offsets = [0, 126], sizes = [2, 256], strides = [1, 1]} : vector<2x512xf32> to vector<2x256xf32>
    %187 = vector.broadcast %185 : f32 to vector<2x256xf32>
    %188 = arith.mulf %187, %186 : vector<2x256xf32>
    %189 = arith.addf %184, %188 : vector<2x256xf32>
    %c29 = arith.constant 29 : index
    %190 = memref.load %arg6[%c29] : memref<98xf32, #tpu.memory_space<smem>>
    %191 = vector.extract_strided_slice %43 {offsets = [0, 142], sizes = [2, 256], strides = [1, 1]} : vector<2x512xf32> to vector<2x256xf32>
    %192 = vector.broadcast %190 : f32 to vector<2x256xf32>
    %193 = arith.mulf %192, %191 : vector<2x256xf32>
    %194 = arith.addf %189, %193 : vector<2x256xf32>
    %c78 = arith.constant 78 : index
    %195 = memref.load %arg6[%c78] : memref<98xf32, #tpu.memory_space<smem>>
    %196 = vector.extract_strided_slice %45 {offsets = [0, 142], sizes = [2, 256], strides = [1, 1]} : vector<2x512xf32> to vector<2x256xf32>
    %197 = vector.broadcast %195 : f32 to vector<2x256xf32>
    %198 = arith.mulf %197, %196 : vector<2x256xf32>
    %199 = arith.addf %194, %198 : vector<2x256xf32>
    %c36 = arith.constant 36 : index
    %200 = memref.load %arg6[%c36] : memref<98xf32, #tpu.memory_space<smem>>
    %201 = vector.extract_strided_slice %43 {offsets = [0, 158], sizes = [2, 256], strides = [1, 1]} : vector<2x512xf32> to vector<2x256xf32>
    %202 = vector.broadcast %200 : f32 to vector<2x256xf32>
    %203 = arith.mulf %202, %201 : vector<2x256xf32>
    %204 = arith.addf %199, %203 : vector<2x256xf32>
    %c85 = arith.constant 85 : index
    %205 = memref.load %arg6[%c85] : memref<98xf32, #tpu.memory_space<smem>>
    %206 = vector.extract_strided_slice %45 {offsets = [0, 158], sizes = [2, 256], strides = [1, 1]} : vector<2x512xf32> to vector<2x256xf32>
    %207 = vector.broadcast %205 : f32 to vector<2x256xf32>
    %208 = arith.mulf %207, %206 : vector<2x256xf32>
    %209 = arith.addf %204, %208 : vector<2x256xf32>
    %c43 = arith.constant 43 : index
    %210 = memref.load %arg6[%c43] : memref<98xf32, #tpu.memory_space<smem>>
    %211 = vector.extract_strided_slice %43 {offsets = [0, 174], sizes = [2, 256], strides = [1, 1]} : vector<2x512xf32> to vector<2x256xf32>
    %212 = vector.broadcast %210 : f32 to vector<2x256xf32>
    %213 = arith.mulf %212, %211 : vector<2x256xf32>
    %214 = arith.addf %209, %213 : vector<2x256xf32>
    %c92 = arith.constant 92 : index
    %215 = memref.load %arg6[%c92] : memref<98xf32, #tpu.memory_space<smem>>
    %216 = vector.extract_strided_slice %45 {offsets = [0, 174], sizes = [2, 256], strides = [1, 1]} : vector<2x512xf32> to vector<2x256xf32>
    %217 = vector.broadcast %215 : f32 to vector<2x256xf32>
    %218 = arith.mulf %217, %216 : vector<2x256xf32>
    %219 = arith.addf %214, %218 : vector<2x256xf32>
    %c-2_i32 = arith.constant -2 : i32
    %220 = vector.broadcast %c-2_i32 : i32 to vector<1x256xi32>
    %221 = arith.addi %62, %220 : vector<1x256xi32>
    %c0_i32_43 = arith.constant 0 : i32
    %222 = vector.broadcast %c0_i32_43 : i32 to vector<1x256xi32>
    %223 = arith.cmpi sge, %221, %222 : vector<1x256xi32>
    %c-2_i32_44 = arith.constant -2 : i32
    %224 = vector.broadcast %c-2_i32_44 : i32 to vector<1x256xi32>
    %225 = arith.addi %62, %224 : vector<1x256xi32>
    %c16_i32_45 = arith.constant 16 : i32
    %226 = vector.broadcast %c16_i32_45 : i32 to vector<1x256xi32>
    %227 = arith.cmpi slt, %225, %226 : vector<1x256xi32>
    %228 = arith.andi %223, %227 : vector<1x256xi1>
    %cst_46 = arith.constant 0.000000e+00 : f32
    %229 = vector.shape_cast %228 : vector<1x256xi1> to vector<1x256xi1>
    %230 = vector.broadcast %229 : vector<1x256xi1> to vector<2x256xi1>
    %231 = vector.broadcast %cst_46 : f32 to vector<2x256xf32>
    %232 = arith.select %230, %219, %231 : vector<2x256xi1>, vector<2x256xf32>
    %233 = arith.addf %148, %232 : vector<2x256xf32>
    %cst_47 = arith.constant 0.000000e+00 : f32
    %234 = vector.broadcast %cst_47 : f32 to vector<2x256xf32>
    %c2 = arith.constant 2 : index
    %235 = memref.load %arg6[%c2] : memref<98xf32, #tpu.memory_space<smem>>
    %236 = vector.extract_strided_slice %43 {offsets = [0, 79], sizes = [2, 256], strides = [1, 1]} : vector<2x512xf32> to vector<2x256xf32>
    %237 = vector.broadcast %235 : f32 to vector<2x256xf32>
    %238 = arith.mulf %237, %236 : vector<2x256xf32>
    %239 = arith.addf %234, %238 : vector<2x256xf32>
    %c51 = arith.constant 51 : index
    %240 = memref.load %arg6[%c51] : memref<98xf32, #tpu.memory_space<smem>>
    %241 = vector.extract_strided_slice %45 {offsets = [0, 79], sizes = [2, 256], strides = [1, 1]} : vector<2x512xf32> to vector<2x256xf32>
    %242 = vector.broadcast %240 : f32 to vector<2x256xf32>
    %243 = arith.mulf %242, %241 : vector<2x256xf32>
    %244 = arith.addf %239, %243 : vector<2x256xf32>
    %c9 = arith.constant 9 : index
    %245 = memref.load %arg6[%c9] : memref<98xf32, #tpu.memory_space<smem>>
    %246 = vector.extract_strided_slice %43 {offsets = [0, 95], sizes = [2, 256], strides = [1, 1]} : vector<2x512xf32> to vector<2x256xf32>
    %247 = vector.broadcast %245 : f32 to vector<2x256xf32>
    %248 = arith.mulf %247, %246 : vector<2x256xf32>
    %249 = arith.addf %244, %248 : vector<2x256xf32>
    %c58 = arith.constant 58 : index
    %250 = memref.load %arg6[%c58] : memref<98xf32, #tpu.memory_space<smem>>
    %251 = vector.extract_strided_slice %45 {offsets = [0, 95], sizes = [2, 256], strides = [1, 1]} : vector<2x512xf32> to vector<2x256xf32>
    %252 = vector.broadcast %250 : f32 to vector<2x256xf32>
    %253 = arith.mulf %252, %251 : vector<2x256xf32>
    %254 = arith.addf %249, %253 : vector<2x256xf32>
    %c16 = arith.constant 16 : index
    %255 = memref.load %arg6[%c16] : memref<98xf32, #tpu.memory_space<smem>>
    %256 = vector.extract_strided_slice %43 {offsets = [0, 111], sizes = [2, 256], strides = [1, 1]} : vector<2x512xf32> to vector<2x256xf32>
    %257 = vector.broadcast %255 : f32 to vector<2x256xf32>
    %258 = arith.mulf %257, %256 : vector<2x256xf32>
    %259 = arith.addf %254, %258 : vector<2x256xf32>
    %c65 = arith.constant 65 : index
    %260 = memref.load %arg6[%c65] : memref<98xf32, #tpu.memory_space<smem>>
    %261 = vector.extract_strided_slice %45 {offsets = [0, 111], sizes = [2, 256], strides = [1, 1]} : vector<2x512xf32> to vector<2x256xf32>
    %262 = vector.broadcast %260 : f32 to vector<2x256xf32>
    %263 = arith.mulf %262, %261 : vector<2x256xf32>
    %264 = arith.addf %259, %263 : vector<2x256xf32>
    %c23 = arith.constant 23 : index
    %265 = memref.load %arg6[%c23] : memref<98xf32, #tpu.memory_space<smem>>
    %266 = vector.extract_strided_slice %43 {offsets = [0, 127], sizes = [2, 256], strides = [1, 1]} : vector<2x512xf32> to vector<2x256xf32>
    %267 = vector.broadcast %265 : f32 to vector<2x256xf32>
    %268 = arith.mulf %267, %266 : vector<2x256xf32>
    %269 = arith.addf %264, %268 : vector<2x256xf32>
    %c72 = arith.constant 72 : index
    %270 = memref.load %arg6[%c72] : memref<98xf32, #tpu.memory_space<smem>>
    %271 = vector.extract_strided_slice %45 {offsets = [0, 127], sizes = [2, 256], strides = [1, 1]} : vector<2x512xf32> to vector<2x256xf32>
    %272 = vector.broadcast %270 : f32 to vector<2x256xf32>
    %273 = arith.mulf %272, %271 : vector<2x256xf32>
    %274 = arith.addf %269, %273 : vector<2x256xf32>
    %c30 = arith.constant 30 : index
    %275 = memref.load %arg6[%c30] : memref<98xf32, #tpu.memory_space<smem>>
    %276 = vector.extract_strided_slice %43 {offsets = [0, 143], sizes = [2, 256], strides = [1, 1]} : vector<2x512xf32> to vector<2x256xf32>
    %277 = vector.broadcast %275 : f32 to vector<2x256xf32>
    %278 = arith.mulf %277, %276 : vector<2x256xf32>
    %279 = arith.addf %274, %278 : vector<2x256xf32>
    %c79 = arith.constant 79 : index
    %280 = memref.load %arg6[%c79] : memref<98xf32, #tpu.memory_space<smem>>
    %281 = vector.extract_strided_slice %45 {offsets = [0, 143], sizes = [2, 256], strides = [1, 1]} : vector<2x512xf32> to vector<2x256xf32>
    %282 = vector.broadcast %280 : f32 to vector<2x256xf32>
    %283 = arith.mulf %282, %281 : vector<2x256xf32>
    %284 = arith.addf %279, %283 : vector<2x256xf32>
    %c37 = arith.constant 37 : index
    %285 = memref.load %arg6[%c37] : memref<98xf32, #tpu.memory_space<smem>>
    %286 = vector.extract_strided_slice %43 {offsets = [0, 159], sizes = [2, 256], strides = [1, 1]} : vector<2x512xf32> to vector<2x256xf32>
    %287 = vector.broadcast %285 : f32 to vector<2x256xf32>
    %288 = arith.mulf %287, %286 : vector<2x256xf32>
    %289 = arith.addf %284, %288 : vector<2x256xf32>
    %c86 = arith.constant 86 : index
    %290 = memref.load %arg6[%c86] : memref<98xf32, #tpu.memory_space<smem>>
    %291 = vector.extract_strided_slice %45 {offsets = [0, 159], sizes = [2, 256], strides = [1, 1]} : vector<2x512xf32> to vector<2x256xf32>
    %292 = vector.broadcast %290 : f32 to vector<2x256xf32>
    %293 = arith.mulf %292, %291 : vector<2x256xf32>
    %294 = arith.addf %289, %293 : vector<2x256xf32>
    %c44 = arith.constant 44 : index
    %295 = memref.load %arg6[%c44] : memref<98xf32, #tpu.memory_space<smem>>
    %296 = vector.extract_strided_slice %43 {offsets = [0, 175], sizes = [2, 256], strides = [1, 1]} : vector<2x512xf32> to vector<2x256xf32>
    %297 = vector.broadcast %295 : f32 to vector<2x256xf32>
    %298 = arith.mulf %297, %296 : vector<2x256xf32>
    %299 = arith.addf %294, %298 : vector<2x256xf32>
    %c93 = arith.constant 93 : index
    %300 = memref.load %arg6[%c93] : memref<98xf32, #tpu.memory_space<smem>>
    %301 = vector.extract_strided_slice %45 {offsets = [0, 175], sizes = [2, 256], strides = [1, 1]} : vector<2x512xf32> to vector<2x256xf32>
    %302 = vector.broadcast %300 : f32 to vector<2x256xf32>
    %303 = arith.mulf %302, %301 : vector<2x256xf32>
    %304 = arith.addf %299, %303 : vector<2x256xf32>
    %c-1_i32 = arith.constant -1 : i32
    %305 = vector.broadcast %c-1_i32 : i32 to vector<1x256xi32>
    %306 = arith.addi %62, %305 : vector<1x256xi32>
    %c0_i32_48 = arith.constant 0 : i32
    %307 = vector.broadcast %c0_i32_48 : i32 to vector<1x256xi32>
    %308 = arith.cmpi sge, %306, %307 : vector<1x256xi32>
    %c-1_i32_49 = arith.constant -1 : i32
    %309 = vector.broadcast %c-1_i32_49 : i32 to vector<1x256xi32>
    %310 = arith.addi %62, %309 : vector<1x256xi32>
    %c16_i32_50 = arith.constant 16 : i32
    %311 = vector.broadcast %c16_i32_50 : i32 to vector<1x256xi32>
    %312 = arith.cmpi slt, %310, %311 : vector<1x256xi32>
    %313 = arith.andi %308, %312 : vector<1x256xi1>
    %cst_51 = arith.constant 0.000000e+00 : f32
    %314 = vector.shape_cast %313 : vector<1x256xi1> to vector<1x256xi1>
    %315 = vector.broadcast %314 : vector<1x256xi1> to vector<2x256xi1>
    %316 = vector.broadcast %cst_51 : f32 to vector<2x256xf32>
    %317 = arith.select %315, %304, %316 : vector<2x256xi1>, vector<2x256xf32>
    %318 = arith.addf %233, %317 : vector<2x256xf32>
    %cst_52 = arith.constant 0.000000e+00 : f32
    %319 = vector.broadcast %cst_52 : f32 to vector<2x256xf32>
    %c3 = arith.constant 3 : index
    %320 = memref.load %arg6[%c3] : memref<98xf32, #tpu.memory_space<smem>>
    %321 = vector.extract_strided_slice %43 {offsets = [0, 80], sizes = [2, 256], strides = [1, 1]} : vector<2x512xf32> to vector<2x256xf32>
    %322 = vector.broadcast %320 : f32 to vector<2x256xf32>
    %323 = arith.mulf %322, %321 : vector<2x256xf32>
    %324 = arith.addf %319, %323 : vector<2x256xf32>
    %c52 = arith.constant 52 : index
    %325 = memref.load %arg6[%c52] : memref<98xf32, #tpu.memory_space<smem>>
    %326 = vector.extract_strided_slice %45 {offsets = [0, 80], sizes = [2, 256], strides = [1, 1]} : vector<2x512xf32> to vector<2x256xf32>
    %327 = vector.broadcast %325 : f32 to vector<2x256xf32>
    %328 = arith.mulf %327, %326 : vector<2x256xf32>
    %329 = arith.addf %324, %328 : vector<2x256xf32>
    %c10 = arith.constant 10 : index
    %330 = memref.load %arg6[%c10] : memref<98xf32, #tpu.memory_space<smem>>
    %331 = vector.extract_strided_slice %43 {offsets = [0, 96], sizes = [2, 256], strides = [1, 1]} : vector<2x512xf32> to vector<2x256xf32>
    %332 = vector.broadcast %330 : f32 to vector<2x256xf32>
    %333 = arith.mulf %332, %331 : vector<2x256xf32>
    %334 = arith.addf %329, %333 : vector<2x256xf32>
    %c59 = arith.constant 59 : index
    %335 = memref.load %arg6[%c59] : memref<98xf32, #tpu.memory_space<smem>>
    %336 = vector.extract_strided_slice %45 {offsets = [0, 96], sizes = [2, 256], strides = [1, 1]} : vector<2x512xf32> to vector<2x256xf32>
    %337 = vector.broadcast %335 : f32 to vector<2x256xf32>
    %338 = arith.mulf %337, %336 : vector<2x256xf32>
    %339 = arith.addf %334, %338 : vector<2x256xf32>
    %c17 = arith.constant 17 : index
    %340 = memref.load %arg6[%c17] : memref<98xf32, #tpu.memory_space<smem>>
    %341 = vector.extract_strided_slice %43 {offsets = [0, 112], sizes = [2, 256], strides = [1, 1]} : vector<2x512xf32> to vector<2x256xf32>
    %342 = vector.broadcast %340 : f32 to vector<2x256xf32>
    %343 = arith.mulf %342, %341 : vector<2x256xf32>
    %344 = arith.addf %339, %343 : vector<2x256xf32>
    %c66 = arith.constant 66 : index
    %345 = memref.load %arg6[%c66] : memref<98xf32, #tpu.memory_space<smem>>
    %346 = vector.extract_strided_slice %45 {offsets = [0, 112], sizes = [2, 256], strides = [1, 1]} : vector<2x512xf32> to vector<2x256xf32>
    %347 = vector.broadcast %345 : f32 to vector<2x256xf32>
    %348 = arith.mulf %347, %346 : vector<2x256xf32>
    %349 = arith.addf %344, %348 : vector<2x256xf32>
    %c24 = arith.constant 24 : index
    %350 = memref.load %arg6[%c24] : memref<98xf32, #tpu.memory_space<smem>>
    %351 = vector.extract_strided_slice %43 {offsets = [0, 128], sizes = [2, 256], strides = [1, 1]} : vector<2x512xf32> to vector<2x256xf32>
    %352 = vector.broadcast %350 : f32 to vector<2x256xf32>
    %353 = arith.mulf %352, %351 : vector<2x256xf32>
    %354 = arith.addf %349, %353 : vector<2x256xf32>
    %c73 = arith.constant 73 : index
    %355 = memref.load %arg6[%c73] : memref<98xf32, #tpu.memory_space<smem>>
    %356 = vector.extract_strided_slice %45 {offsets = [0, 128], sizes = [2, 256], strides = [1, 1]} : vector<2x512xf32> to vector<2x256xf32>
    %357 = vector.broadcast %355 : f32 to vector<2x256xf32>
    %358 = arith.mulf %357, %356 : vector<2x256xf32>
    %359 = arith.addf %354, %358 : vector<2x256xf32>
    %c31 = arith.constant 31 : index
    %360 = memref.load %arg6[%c31] : memref<98xf32, #tpu.memory_space<smem>>
    %361 = vector.extract_strided_slice %43 {offsets = [0, 144], sizes = [2, 256], strides = [1, 1]} : vector<2x512xf32> to vector<2x256xf32>
    %362 = vector.broadcast %360 : f32 to vector<2x256xf32>
    %363 = arith.mulf %362, %361 : vector<2x256xf32>
    %364 = arith.addf %359, %363 : vector<2x256xf32>
    %c80 = arith.constant 80 : index
    %365 = memref.load %arg6[%c80] : memref<98xf32, #tpu.memory_space<smem>>
    %366 = vector.extract_strided_slice %45 {offsets = [0, 144], sizes = [2, 256], strides = [1, 1]} : vector<2x512xf32> to vector<2x256xf32>
    %367 = vector.broadcast %365 : f32 to vector<2x256xf32>
    %368 = arith.mulf %367, %366 : vector<2x256xf32>
    %369 = arith.addf %364, %368 : vector<2x256xf32>
    %c38 = arith.constant 38 : index
    %370 = memref.load %arg6[%c38] : memref<98xf32, #tpu.memory_space<smem>>
    %371 = vector.extract_strided_slice %43 {offsets = [0, 160], sizes = [2, 256], strides = [1, 1]} : vector<2x512xf32> to vector<2x256xf32>
    %372 = vector.broadcast %370 : f32 to vector<2x256xf32>
    %373 = arith.mulf %372, %371 : vector<2x256xf32>
    %374 = arith.addf %369, %373 : vector<2x256xf32>
    %c87 = arith.constant 87 : index
    %375 = memref.load %arg6[%c87] : memref<98xf32, #tpu.memory_space<smem>>
    %376 = vector.extract_strided_slice %45 {offsets = [0, 160], sizes = [2, 256], strides = [1, 1]} : vector<2x512xf32> to vector<2x256xf32>
    %377 = vector.broadcast %375 : f32 to vector<2x256xf32>
    %378 = arith.mulf %377, %376 : vector<2x256xf32>
    %379 = arith.addf %374, %378 : vector<2x256xf32>
    %c45 = arith.constant 45 : index
    %380 = memref.load %arg6[%c45] : memref<98xf32, #tpu.memory_space<smem>>
    %381 = vector.extract_strided_slice %43 {offsets = [0, 176], sizes = [2, 256], strides = [1, 1]} : vector<2x512xf32> to vector<2x256xf32>
    %382 = vector.broadcast %380 : f32 to vector<2x256xf32>
    %383 = arith.mulf %382, %381 : vector<2x256xf32>
    %384 = arith.addf %379, %383 : vector<2x256xf32>
    %c94 = arith.constant 94 : index
    %385 = memref.load %arg6[%c94] : memref<98xf32, #tpu.memory_space<smem>>
    %386 = vector.extract_strided_slice %45 {offsets = [0, 176], sizes = [2, 256], strides = [1, 1]} : vector<2x512xf32> to vector<2x256xf32>
    %387 = vector.broadcast %385 : f32 to vector<2x256xf32>
    %388 = arith.mulf %387, %386 : vector<2x256xf32>
    %389 = arith.addf %384, %388 : vector<2x256xf32>
    %c0_i32_53 = arith.constant 0 : i32
    %390 = vector.broadcast %c0_i32_53 : i32 to vector<1x256xi32>
    %391 = arith.addi %62, %390 : vector<1x256xi32>
    %c0_i32_54 = arith.constant 0 : i32
    %392 = vector.broadcast %c0_i32_54 : i32 to vector<1x256xi32>
    %393 = arith.cmpi sge, %391, %392 : vector<1x256xi32>
    %c0_i32_55 = arith.constant 0 : i32
    %394 = vector.broadcast %c0_i32_55 : i32 to vector<1x256xi32>
    %395 = arith.addi %62, %394 : vector<1x256xi32>
    %c16_i32_56 = arith.constant 16 : i32
    %396 = vector.broadcast %c16_i32_56 : i32 to vector<1x256xi32>
    %397 = arith.cmpi slt, %395, %396 : vector<1x256xi32>
    %398 = arith.andi %393, %397 : vector<1x256xi1>
    %cst_57 = arith.constant 0.000000e+00 : f32
    %399 = vector.shape_cast %398 : vector<1x256xi1> to vector<1x256xi1>
    %400 = vector.broadcast %399 : vector<1x256xi1> to vector<2x256xi1>
    %401 = vector.broadcast %cst_57 : f32 to vector<2x256xf32>
    %402 = arith.select %400, %389, %401 : vector<2x256xi1>, vector<2x256xf32>
    %403 = arith.addf %318, %402 : vector<2x256xf32>
    %cst_58 = arith.constant 0.000000e+00 : f32
    %404 = vector.broadcast %cst_58 : f32 to vector<2x256xf32>
    %c4 = arith.constant 4 : index
    %405 = memref.load %arg6[%c4] : memref<98xf32, #tpu.memory_space<smem>>
    %406 = vector.extract_strided_slice %43 {offsets = [0, 81], sizes = [2, 256], strides = [1, 1]} : vector<2x512xf32> to vector<2x256xf32>
    %407 = vector.broadcast %405 : f32 to vector<2x256xf32>
    %408 = arith.mulf %407, %406 : vector<2x256xf32>
    %409 = arith.addf %404, %408 : vector<2x256xf32>
    %c53 = arith.constant 53 : index
    %410 = memref.load %arg6[%c53] : memref<98xf32, #tpu.memory_space<smem>>
    %411 = vector.extract_strided_slice %45 {offsets = [0, 81], sizes = [2, 256], strides = [1, 1]} : vector<2x512xf32> to vector<2x256xf32>
    %412 = vector.broadcast %410 : f32 to vector<2x256xf32>
    %413 = arith.mulf %412, %411 : vector<2x256xf32>
    %414 = arith.addf %409, %413 : vector<2x256xf32>
    %c11 = arith.constant 11 : index
    %415 = memref.load %arg6[%c11] : memref<98xf32, #tpu.memory_space<smem>>
    %416 = vector.extract_strided_slice %43 {offsets = [0, 97], sizes = [2, 256], strides = [1, 1]} : vector<2x512xf32> to vector<2x256xf32>
    %417 = vector.broadcast %415 : f32 to vector<2x256xf32>
    %418 = arith.mulf %417, %416 : vector<2x256xf32>
    %419 = arith.addf %414, %418 : vector<2x256xf32>
    %c60 = arith.constant 60 : index
    %420 = memref.load %arg6[%c60] : memref<98xf32, #tpu.memory_space<smem>>
    %421 = vector.extract_strided_slice %45 {offsets = [0, 97], sizes = [2, 256], strides = [1, 1]} : vector<2x512xf32> to vector<2x256xf32>
    %422 = vector.broadcast %420 : f32 to vector<2x256xf32>
    %423 = arith.mulf %422, %421 : vector<2x256xf32>
    %424 = arith.addf %419, %423 : vector<2x256xf32>
    %c18 = arith.constant 18 : index
    %425 = memref.load %arg6[%c18] : memref<98xf32, #tpu.memory_space<smem>>
    %426 = vector.extract_strided_slice %43 {offsets = [0, 113], sizes = [2, 256], strides = [1, 1]} : vector<2x512xf32> to vector<2x256xf32>
    %427 = vector.broadcast %425 : f32 to vector<2x256xf32>
    %428 = arith.mulf %427, %426 : vector<2x256xf32>
    %429 = arith.addf %424, %428 : vector<2x256xf32>
    %c67 = arith.constant 67 : index
    %430 = memref.load %arg6[%c67] : memref<98xf32, #tpu.memory_space<smem>>
    %431 = vector.extract_strided_slice %45 {offsets = [0, 113], sizes = [2, 256], strides = [1, 1]} : vector<2x512xf32> to vector<2x256xf32>
    %432 = vector.broadcast %430 : f32 to vector<2x256xf32>
    %433 = arith.mulf %432, %431 : vector<2x256xf32>
    %434 = arith.addf %429, %433 : vector<2x256xf32>
    %c25 = arith.constant 25 : index
    %435 = memref.load %arg6[%c25] : memref<98xf32, #tpu.memory_space<smem>>
    %436 = vector.extract_strided_slice %43 {offsets = [0, 129], sizes = [2, 256], strides = [1, 1]} : vector<2x512xf32> to vector<2x256xf32>
    %437 = vector.broadcast %435 : f32 to vector<2x256xf32>
    %438 = arith.mulf %437, %436 : vector<2x256xf32>
    %439 = arith.addf %434, %438 : vector<2x256xf32>
    %c74 = arith.constant 74 : index
    %440 = memref.load %arg6[%c74] : memref<98xf32, #tpu.memory_space<smem>>
    %441 = vector.extract_strided_slice %45 {offsets = [0, 129], sizes = [2, 256], strides = [1, 1]} : vector<2x512xf32> to vector<2x256xf32>
    %442 = vector.broadcast %440 : f32 to vector<2x256xf32>
    %443 = arith.mulf %442, %441 : vector<2x256xf32>
    %444 = arith.addf %439, %443 : vector<2x256xf32>
    %c32 = arith.constant 32 : index
    %445 = memref.load %arg6[%c32] : memref<98xf32, #tpu.memory_space<smem>>
    %446 = vector.extract_strided_slice %43 {offsets = [0, 145], sizes = [2, 256], strides = [1, 1]} : vector<2x512xf32> to vector<2x256xf32>
    %447 = vector.broadcast %445 : f32 to vector<2x256xf32>
    %448 = arith.mulf %447, %446 : vector<2x256xf32>
    %449 = arith.addf %444, %448 : vector<2x256xf32>
    %c81 = arith.constant 81 : index
    %450 = memref.load %arg6[%c81] : memref<98xf32, #tpu.memory_space<smem>>
    %451 = vector.extract_strided_slice %45 {offsets = [0, 145], sizes = [2, 256], strides = [1, 1]} : vector<2x512xf32> to vector<2x256xf32>
    %452 = vector.broadcast %450 : f32 to vector<2x256xf32>
    %453 = arith.mulf %452, %451 : vector<2x256xf32>
    %454 = arith.addf %449, %453 : vector<2x256xf32>
    %c39 = arith.constant 39 : index
    %455 = memref.load %arg6[%c39] : memref<98xf32, #tpu.memory_space<smem>>
    %456 = vector.extract_strided_slice %43 {offsets = [0, 161], sizes = [2, 256], strides = [1, 1]} : vector<2x512xf32> to vector<2x256xf32>
    %457 = vector.broadcast %455 : f32 to vector<2x256xf32>
    %458 = arith.mulf %457, %456 : vector<2x256xf32>
    %459 = arith.addf %454, %458 : vector<2x256xf32>
    %c88 = arith.constant 88 : index
    %460 = memref.load %arg6[%c88] : memref<98xf32, #tpu.memory_space<smem>>
    %461 = vector.extract_strided_slice %45 {offsets = [0, 161], sizes = [2, 256], strides = [1, 1]} : vector<2x512xf32> to vector<2x256xf32>
    %462 = vector.broadcast %460 : f32 to vector<2x256xf32>
    %463 = arith.mulf %462, %461 : vector<2x256xf32>
    %464 = arith.addf %459, %463 : vector<2x256xf32>
    %c46 = arith.constant 46 : index
    %465 = memref.load %arg6[%c46] : memref<98xf32, #tpu.memory_space<smem>>
    %466 = vector.extract_strided_slice %43 {offsets = [0, 177], sizes = [2, 256], strides = [1, 1]} : vector<2x512xf32> to vector<2x256xf32>
    %467 = vector.broadcast %465 : f32 to vector<2x256xf32>
    %468 = arith.mulf %467, %466 : vector<2x256xf32>
    %469 = arith.addf %464, %468 : vector<2x256xf32>
    %c95 = arith.constant 95 : index
    %470 = memref.load %arg6[%c95] : memref<98xf32, #tpu.memory_space<smem>>
    %471 = vector.extract_strided_slice %45 {offsets = [0, 177], sizes = [2, 256], strides = [1, 1]} : vector<2x512xf32> to vector<2x256xf32>
    %472 = vector.broadcast %470 : f32 to vector<2x256xf32>
    %473 = arith.mulf %472, %471 : vector<2x256xf32>
    %474 = arith.addf %469, %473 : vector<2x256xf32>
    %c1_i32_59 = arith.constant 1 : i32
    %475 = vector.broadcast %c1_i32_59 : i32 to vector<1x256xi32>
    %476 = arith.addi %62, %475 : vector<1x256xi32>
    %c0_i32_60 = arith.constant 0 : i32
    %477 = vector.broadcast %c0_i32_60 : i32 to vector<1x256xi32>
    %478 = arith.cmpi sge, %476, %477 : vector<1x256xi32>
    %c1_i32_61 = arith.constant 1 : i32
    %479 = vector.broadcast %c1_i32_61 : i32 to vector<1x256xi32>
    %480 = arith.addi %62, %479 : vector<1x256xi32>
    %c16_i32_62 = arith.constant 16 : i32
    %481 = vector.broadcast %c16_i32_62 : i32 to vector<1x256xi32>
    %482 = arith.cmpi slt, %480, %481 : vector<1x256xi32>
    %483 = arith.andi %478, %482 : vector<1x256xi1>
    %cst_63 = arith.constant 0.000000e+00 : f32
    %484 = vector.shape_cast %483 : vector<1x256xi1> to vector<1x256xi1>
    %485 = vector.broadcast %484 : vector<1x256xi1> to vector<2x256xi1>
    %486 = vector.broadcast %cst_63 : f32 to vector<2x256xf32>
    %487 = arith.select %485, %474, %486 : vector<2x256xi1>, vector<2x256xf32>
    %488 = arith.addf %403, %487 : vector<2x256xf32>
    %cst_64 = arith.constant 0.000000e+00 : f32
    %489 = vector.broadcast %cst_64 : f32 to vector<2x256xf32>
    %c5 = arith.constant 5 : index
    %490 = memref.load %arg6[%c5] : memref<98xf32, #tpu.memory_space<smem>>
    %491 = vector.extract_strided_slice %43 {offsets = [0, 82], sizes = [2, 256], strides = [1, 1]} : vector<2x512xf32> to vector<2x256xf32>
    %492 = vector.broadcast %490 : f32 to vector<2x256xf32>
    %493 = arith.mulf %492, %491 : vector<2x256xf32>
    %494 = arith.addf %489, %493 : vector<2x256xf32>
    %c54 = arith.constant 54 : index
    %495 = memref.load %arg6[%c54] : memref<98xf32, #tpu.memory_space<smem>>
    %496 = vector.extract_strided_slice %45 {offsets = [0, 82], sizes = [2, 256], strides = [1, 1]} : vector<2x512xf32> to vector<2x256xf32>
    %497 = vector.broadcast %495 : f32 to vector<2x256xf32>
    %498 = arith.mulf %497, %496 : vector<2x256xf32>
    %499 = arith.addf %494, %498 : vector<2x256xf32>
    %c12 = arith.constant 12 : index
    %500 = memref.load %arg6[%c12] : memref<98xf32, #tpu.memory_space<smem>>
    %501 = vector.extract_strided_slice %43 {offsets = [0, 98], sizes = [2, 256], strides = [1, 1]} : vector<2x512xf32> to vector<2x256xf32>
    %502 = vector.broadcast %500 : f32 to vector<2x256xf32>
    %503 = arith.mulf %502, %501 : vector<2x256xf32>
    %504 = arith.addf %499, %503 : vector<2x256xf32>
    %c61 = arith.constant 61 : index
    %505 = memref.load %arg6[%c61] : memref<98xf32, #tpu.memory_space<smem>>
    %506 = vector.extract_strided_slice %45 {offsets = [0, 98], sizes = [2, 256], strides = [1, 1]} : vector<2x512xf32> to vector<2x256xf32>
    %507 = vector.broadcast %505 : f32 to vector<2x256xf32>
    %508 = arith.mulf %507, %506 : vector<2x256xf32>
    %509 = arith.addf %504, %508 : vector<2x256xf32>
    %c19 = arith.constant 19 : index
    %510 = memref.load %arg6[%c19] : memref<98xf32, #tpu.memory_space<smem>>
    %511 = vector.extract_strided_slice %43 {offsets = [0, 114], sizes = [2, 256], strides = [1, 1]} : vector<2x512xf32> to vector<2x256xf32>
    %512 = vector.broadcast %510 : f32 to vector<2x256xf32>
    %513 = arith.mulf %512, %511 : vector<2x256xf32>
    %514 = arith.addf %509, %513 : vector<2x256xf32>
    %c68 = arith.constant 68 : index
    %515 = memref.load %arg6[%c68] : memref<98xf32, #tpu.memory_space<smem>>
    %516 = vector.extract_strided_slice %45 {offsets = [0, 114], sizes = [2, 256], strides = [1, 1]} : vector<2x512xf32> to vector<2x256xf32>
    %517 = vector.broadcast %515 : f32 to vector<2x256xf32>
    %518 = arith.mulf %517, %516 : vector<2x256xf32>
    %519 = arith.addf %514, %518 : vector<2x256xf32>
    %c26 = arith.constant 26 : index
    %520 = memref.load %arg6[%c26] : memref<98xf32, #tpu.memory_space<smem>>
    %521 = vector.extract_strided_slice %43 {offsets = [0, 130], sizes = [2, 256], strides = [1, 1]} : vector<2x512xf32> to vector<2x256xf32>
    %522 = vector.broadcast %520 : f32 to vector<2x256xf32>
    %523 = arith.mulf %522, %521 : vector<2x256xf32>
    %524 = arith.addf %519, %523 : vector<2x256xf32>
    %c75 = arith.constant 75 : index
    %525 = memref.load %arg6[%c75] : memref<98xf32, #tpu.memory_space<smem>>
    %526 = vector.extract_strided_slice %45 {offsets = [0, 130], sizes = [2, 256], strides = [1, 1]} : vector<2x512xf32> to vector<2x256xf32>
    %527 = vector.broadcast %525 : f32 to vector<2x256xf32>
    %528 = arith.mulf %527, %526 : vector<2x256xf32>
    %529 = arith.addf %524, %528 : vector<2x256xf32>
    %c33 = arith.constant 33 : index
    %530 = memref.load %arg6[%c33] : memref<98xf32, #tpu.memory_space<smem>>
    %531 = vector.extract_strided_slice %43 {offsets = [0, 146], sizes = [2, 256], strides = [1, 1]} : vector<2x512xf32> to vector<2x256xf32>
    %532 = vector.broadcast %530 : f32 to vector<2x256xf32>
    %533 = arith.mulf %532, %531 : vector<2x256xf32>
    %534 = arith.addf %529, %533 : vector<2x256xf32>
    %c82 = arith.constant 82 : index
    %535 = memref.load %arg6[%c82] : memref<98xf32, #tpu.memory_space<smem>>
    %536 = vector.extract_strided_slice %45 {offsets = [0, 146], sizes = [2, 256], strides = [1, 1]} : vector<2x512xf32> to vector<2x256xf32>
    %537 = vector.broadcast %535 : f32 to vector<2x256xf32>
    %538 = arith.mulf %537, %536 : vector<2x256xf32>
    %539 = arith.addf %534, %538 : vector<2x256xf32>
    %c40 = arith.constant 40 : index
    %540 = memref.load %arg6[%c40] : memref<98xf32, #tpu.memory_space<smem>>
    %541 = vector.extract_strided_slice %43 {offsets = [0, 162], sizes = [2, 256], strides = [1, 1]} : vector<2x512xf32> to vector<2x256xf32>
    %542 = vector.broadcast %540 : f32 to vector<2x256xf32>
    %543 = arith.mulf %542, %541 : vector<2x256xf32>
    %544 = arith.addf %539, %543 : vector<2x256xf32>
    %c89 = arith.constant 89 : index
    %545 = memref.load %arg6[%c89] : memref<98xf32, #tpu.memory_space<smem>>
    %546 = vector.extract_strided_slice %45 {offsets = [0, 162], sizes = [2, 256], strides = [1, 1]} : vector<2x512xf32> to vector<2x256xf32>
    %547 = vector.broadcast %545 : f32 to vector<2x256xf32>
    %548 = arith.mulf %547, %546 : vector<2x256xf32>
    %549 = arith.addf %544, %548 : vector<2x256xf32>
    %c47 = arith.constant 47 : index
    %550 = memref.load %arg6[%c47] : memref<98xf32, #tpu.memory_space<smem>>
    %551 = vector.extract_strided_slice %43 {offsets = [0, 178], sizes = [2, 256], strides = [1, 1]} : vector<2x512xf32> to vector<2x256xf32>
    %552 = vector.broadcast %550 : f32 to vector<2x256xf32>
    %553 = arith.mulf %552, %551 : vector<2x256xf32>
    %554 = arith.addf %549, %553 : vector<2x256xf32>
    %c96 = arith.constant 96 : index
    %555 = memref.load %arg6[%c96] : memref<98xf32, #tpu.memory_space<smem>>
    %556 = vector.extract_strided_slice %45 {offsets = [0, 178], sizes = [2, 256], strides = [1, 1]} : vector<2x512xf32> to vector<2x256xf32>
    %557 = vector.broadcast %555 : f32 to vector<2x256xf32>
    %558 = arith.mulf %557, %556 : vector<2x256xf32>
    %559 = arith.addf %554, %558 : vector<2x256xf32>
    %c2_i32 = arith.constant 2 : i32
    %560 = vector.broadcast %c2_i32 : i32 to vector<1x256xi32>
    %561 = arith.addi %62, %560 : vector<1x256xi32>
    %c0_i32_65 = arith.constant 0 : i32
    %562 = vector.broadcast %c0_i32_65 : i32 to vector<1x256xi32>
    %563 = arith.cmpi sge, %561, %562 : vector<1x256xi32>
    %c2_i32_66 = arith.constant 2 : i32
    %564 = vector.broadcast %c2_i32_66 : i32 to vector<1x256xi32>
    %565 = arith.addi %62, %564 : vector<1x256xi32>
    %c16_i32_67 = arith.constant 16 : i32
    %566 = vector.broadcast %c16_i32_67 : i32 to vector<1x256xi32>
    %567 = arith.cmpi slt, %565, %566 : vector<1x256xi32>
    %568 = arith.andi %563, %567 : vector<1x256xi1>
    %cst_68 = arith.constant 0.000000e+00 : f32
    %569 = vector.shape_cast %568 : vector<1x256xi1> to vector<1x256xi1>
    %570 = vector.broadcast %569 : vector<1x256xi1> to vector<2x256xi1>
    %571 = vector.broadcast %cst_68 : f32 to vector<2x256xf32>
    %572 = arith.select %570, %559, %571 : vector<2x256xi1>, vector<2x256xf32>
    %573 = arith.addf %488, %572 : vector<2x256xf32>
    %cst_69 = arith.constant 0.000000e+00 : f32
    %574 = vector.broadcast %cst_69 : f32 to vector<2x256xf32>
    %c6 = arith.constant 6 : index
    %575 = memref.load %arg6[%c6] : memref<98xf32, #tpu.memory_space<smem>>
    %576 = vector.extract_strided_slice %43 {offsets = [0, 83], sizes = [2, 256], strides = [1, 1]} : vector<2x512xf32> to vector<2x256xf32>
    %577 = vector.broadcast %575 : f32 to vector<2x256xf32>
    %578 = arith.mulf %577, %576 : vector<2x256xf32>
    %579 = arith.addf %574, %578 : vector<2x256xf32>
    %c55 = arith.constant 55 : index
    %580 = memref.load %arg6[%c55] : memref<98xf32, #tpu.memory_space<smem>>
    %581 = vector.extract_strided_slice %45 {offsets = [0, 83], sizes = [2, 256], strides = [1, 1]} : vector<2x512xf32> to vector<2x256xf32>
    %582 = vector.broadcast %580 : f32 to vector<2x256xf32>
    %583 = arith.mulf %582, %581 : vector<2x256xf32>
    %584 = arith.addf %579, %583 : vector<2x256xf32>
    %c13 = arith.constant 13 : index
    %585 = memref.load %arg6[%c13] : memref<98xf32, #tpu.memory_space<smem>>
    %586 = vector.extract_strided_slice %43 {offsets = [0, 99], sizes = [2, 256], strides = [1, 1]} : vector<2x512xf32> to vector<2x256xf32>
    %587 = vector.broadcast %585 : f32 to vector<2x256xf32>
    %588 = arith.mulf %587, %586 : vector<2x256xf32>
    %589 = arith.addf %584, %588 : vector<2x256xf32>
    %c62 = arith.constant 62 : index
    %590 = memref.load %arg6[%c62] : memref<98xf32, #tpu.memory_space<smem>>
    %591 = vector.extract_strided_slice %45 {offsets = [0, 99], sizes = [2, 256], strides = [1, 1]} : vector<2x512xf32> to vector<2x256xf32>
    %592 = vector.broadcast %590 : f32 to vector<2x256xf32>
    %593 = arith.mulf %592, %591 : vector<2x256xf32>
    %594 = arith.addf %589, %593 : vector<2x256xf32>
    %c20 = arith.constant 20 : index
    %595 = memref.load %arg6[%c20] : memref<98xf32, #tpu.memory_space<smem>>
    %596 = vector.extract_strided_slice %43 {offsets = [0, 115], sizes = [2, 256], strides = [1, 1]} : vector<2x512xf32> to vector<2x256xf32>
    %597 = vector.broadcast %595 : f32 to vector<2x256xf32>
    %598 = arith.mulf %597, %596 : vector<2x256xf32>
    %599 = arith.addf %594, %598 : vector<2x256xf32>
    %c69 = arith.constant 69 : index
    %600 = memref.load %arg6[%c69] : memref<98xf32, #tpu.memory_space<smem>>
    %601 = vector.extract_strided_slice %45 {offsets = [0, 115], sizes = [2, 256], strides = [1, 1]} : vector<2x512xf32> to vector<2x256xf32>
    %602 = vector.broadcast %600 : f32 to vector<2x256xf32>
    %603 = arith.mulf %602, %601 : vector<2x256xf32>
    %604 = arith.addf %599, %603 : vector<2x256xf32>
    %c27 = arith.constant 27 : index
    %605 = memref.load %arg6[%c27] : memref<98xf32, #tpu.memory_space<smem>>
    %606 = vector.extract_strided_slice %43 {offsets = [0, 131], sizes = [2, 256], strides = [1, 1]} : vector<2x512xf32> to vector<2x256xf32>
    %607 = vector.broadcast %605 : f32 to vector<2x256xf32>
    %608 = arith.mulf %607, %606 : vector<2x256xf32>
    %609 = arith.addf %604, %608 : vector<2x256xf32>
    %c76 = arith.constant 76 : index
    %610 = memref.load %arg6[%c76] : memref<98xf32, #tpu.memory_space<smem>>
    %611 = vector.extract_strided_slice %45 {offsets = [0, 131], sizes = [2, 256], strides = [1, 1]} : vector<2x512xf32> to vector<2x256xf32>
    %612 = vector.broadcast %610 : f32 to vector<2x256xf32>
    %613 = arith.mulf %612, %611 : vector<2x256xf32>
    %614 = arith.addf %609, %613 : vector<2x256xf32>
    %c34 = arith.constant 34 : index
    %615 = memref.load %arg6[%c34] : memref<98xf32, #tpu.memory_space<smem>>
    %616 = vector.extract_strided_slice %43 {offsets = [0, 147], sizes = [2, 256], strides = [1, 1]} : vector<2x512xf32> to vector<2x256xf32>
    %617 = vector.broadcast %615 : f32 to vector<2x256xf32>
    %618 = arith.mulf %617, %616 : vector<2x256xf32>
    %619 = arith.addf %614, %618 : vector<2x256xf32>
    %c83 = arith.constant 83 : index
    %620 = memref.load %arg6[%c83] : memref<98xf32, #tpu.memory_space<smem>>
    %621 = vector.extract_strided_slice %45 {offsets = [0, 147], sizes = [2, 256], strides = [1, 1]} : vector<2x512xf32> to vector<2x256xf32>
    %622 = vector.broadcast %620 : f32 to vector<2x256xf32>
    %623 = arith.mulf %622, %621 : vector<2x256xf32>
    %624 = arith.addf %619, %623 : vector<2x256xf32>
    %c41 = arith.constant 41 : index
    %625 = memref.load %arg6[%c41] : memref<98xf32, #tpu.memory_space<smem>>
    %626 = vector.extract_strided_slice %43 {offsets = [0, 163], sizes = [2, 256], strides = [1, 1]} : vector<2x512xf32> to vector<2x256xf32>
    %627 = vector.broadcast %625 : f32 to vector<2x256xf32>
    %628 = arith.mulf %627, %626 : vector<2x256xf32>
    %629 = arith.addf %624, %628 : vector<2x256xf32>
    %c90 = arith.constant 90 : index
    %630 = memref.load %arg6[%c90] : memref<98xf32, #tpu.memory_space<smem>>
    %631 = vector.extract_strided_slice %45 {offsets = [0, 163], sizes = [2, 256], strides = [1, 1]} : vector<2x512xf32> to vector<2x256xf32>
    %632 = vector.broadcast %630 : f32 to vector<2x256xf32>
    %633 = arith.mulf %632, %631 : vector<2x256xf32>
    %634 = arith.addf %629, %633 : vector<2x256xf32>
    %c48 = arith.constant 48 : index
    %635 = memref.load %arg6[%c48] : memref<98xf32, #tpu.memory_space<smem>>
    %636 = vector.extract_strided_slice %43 {offsets = [0, 179], sizes = [2, 256], strides = [1, 1]} : vector<2x512xf32> to vector<2x256xf32>
    %637 = vector.broadcast %635 : f32 to vector<2x256xf32>
    %638 = arith.mulf %637, %636 : vector<2x256xf32>
    %639 = arith.addf %634, %638 : vector<2x256xf32>
    %c97 = arith.constant 97 : index
    %640 = memref.load %arg6[%c97] : memref<98xf32, #tpu.memory_space<smem>>
    %641 = vector.extract_strided_slice %45 {offsets = [0, 179], sizes = [2, 256], strides = [1, 1]} : vector<2x512xf32> to vector<2x256xf32>
    %642 = vector.broadcast %640 : f32 to vector<2x256xf32>
    %643 = arith.mulf %642, %641 : vector<2x256xf32>
    %644 = arith.addf %639, %643 : vector<2x256xf32>
    %c3_i32 = arith.constant 3 : i32
    %645 = vector.broadcast %c3_i32 : i32 to vector<1x256xi32>
    %646 = arith.addi %62, %645 : vector<1x256xi32>
    %c0_i32_70 = arith.constant 0 : i32
    %647 = vector.broadcast %c0_i32_70 : i32 to vector<1x256xi32>
    %648 = arith.cmpi sge, %646, %647 : vector<1x256xi32>
    %c3_i32_71 = arith.constant 3 : i32
    %649 = vector.broadcast %c3_i32_71 : i32 to vector<1x256xi32>
    %650 = arith.addi %62, %649 : vector<1x256xi32>
    %c16_i32_72 = arith.constant 16 : i32
    %651 = vector.broadcast %c16_i32_72 : i32 to vector<1x256xi32>
    %652 = arith.cmpi slt, %650, %651 : vector<1x256xi32>
    %653 = arith.andi %648, %652 : vector<1x256xi1>
    %cst_73 = arith.constant 0.000000e+00 : f32
    %654 = vector.shape_cast %653 : vector<1x256xi1> to vector<1x256xi1>
    %655 = vector.broadcast %654 : vector<1x256xi1> to vector<2x256xi1>
    %656 = vector.broadcast %cst_73 : f32 to vector<2x256xf32>
    %657 = arith.select %655, %644, %656 : vector<2x256xi1>, vector<2x256xf32>
    %658 = arith.addf %573, %657 : vector<2x256xf32>
    %659 = arith.negf %658 : vector<2x256xf32>
    %660 = math.exp %659 : vector<2x256xf32>
    %cst_74 = arith.constant 1.000000e+00 : f32
    %661 = vector.broadcast %cst_74 : f32 to vector<2x256xf32>
    %662 = arith.addf %661, %660 : vector<2x256xf32>
    %663 = arith.divf %661, %662 : vector<2x256xf32>
    %664 = vector.shape_cast %663 : vector<2x256xf32> to vector<2x1x256xf32>
    %665 = vector.broadcast %664 : vector<2x1x256xf32> to vector<2x16x256xf32>
    %666 = arith.mulf %28, %665 : vector<2x16x256xf32>
    %c0_75 = arith.constant 0 : index
    %c0_76 = arith.constant 0 : index
    %c0_77 = arith.constant 0 : index
    %667 = vector.load %arg7[%c0_75, %c0_76, %c0_77] : memref<2x16x256xf32, #tpu.memory_space<vmem>>, vector<2x16x256xf32>
    tpu.vector_store %arg7[%c0_75, %c0_76, %c0_77], %666 {strides = array<i32>} : memref<2x16x256xf32, #tpu.memory_space<vmem>>, vector<2x16x256xf32>,
    return
  }
  func.func @transform_0(%arg0: i32) -> (i32, i32, i32) {
    %c0_i32 = arith.constant 0 : i32
    %c0_i32_0 = arith.constant 0 : i32
    %c0_i32_1 = arith.constant 0 : i32
    return %arg0, %c0_i32, %c0_i32_0 : i32, i32, i32
  }
  func.func @transform_1(%arg0: i32) -> (i32, i32) {
    %c0_i32 = arith.constant 0 : i32
    %c0_i32_0 = arith.constant 0 : i32
    %c0_i32_1 = arith.constant 0 : i32
    return %c0_i32, %c0_i32_0 : i32, i32
  }
  func.func @transform_2(%arg0: i32) -> (i32, i32) {
    %c0_i32 = arith.constant 0 : i32
    %c0_i32_0 = arith.constant 0 : i32
    %c0_i32_1 = arith.constant 0 : i32
    return %c0_i32, %c0_i32_0 : i32, i32
  }
  func.func @transform_3(%arg0: i32) -> (i32, i32) {
    %c0_i32 = arith.constant 0 : i32
    %c0_i32_0 = arith.constant 0 : i32
    %c0_i32_1 = arith.constant 0 : i32
    return %c0_i32, %c0_i32_0 : i32, i32
  }
  func.func @transform_4(%arg0: i32) -> (i32, i32) {
    %c0_i32 = arith.constant 0 : i32
    %c0_i32_0 = arith.constant 0 : i32
    %c0_i32_1 = arith.constant 0 : i32
    return %c0_i32, %c0_i32_0 : i32, i32
  }
  func.func @transform_5(%arg0: i32) -> i32 {
    %c0_i32 = arith.constant 0 : i32
    %c0_i32_0 = arith.constant 0 : i32
    return %c0_i32 : i32
  }
  func.func @transform_6(%arg0: i32) -> (i32, i32, i32) {
    %c0_i32 = arith.constant 0 : i32
    %c0_i32_0 = arith.constant 0 : i32
    %c0_i32_1 = arith.constant 0 : i32
    return %arg0, %c0_i32, %c0_i32_0 : i32, i32, i32
  }
}

</mosaic_0001>

<llo_original>
// kernel: tpu_custom_call.1
$region0: #{tpu_custom_call.1}
  #allocation0 [shape = 'u32[]', space=smem, size = 0x4, offset = 0x4, fixed_abs, tag = 'smem constant byte address 0x4 - core index']
  #allocation1 [shape = 'u32[144,128]{1,0:T(1,128)}', space=vmem, size = 0x12000, scoped, tag = 'internal scratch']
  #allocation2 [shape = 'f32[2,2,512]{2,1,0:T(2,128)}', space=vmem, size = 0x2000, scoped, tag = 'scratch operand']
  %s0 = inlined_call_operand.hbm [shape: f32[2,16,256], index: 0, kind: input, shape index: {}]
  %s1 = inlined_call_operand.vmem [shape: f32[16,2], index: 1, kind: input, shape index: {}]
  %s2 = inlined_call_operand.vmem [shape: f32[1,2], index: 2, kind: input, shape index: {}]
  %s3 = inlined_call_operand.vmem [shape: f32[2,16], index: 3, kind: input, shape index: {}]
  %s4 = inlined_call_operand.vmem [shape: f32[1,16], index: 4, kind: input, shape index: {}]
  %s5 = inlined_call_operand.vmem [shape: f32[98], index: 5, kind: input, shape index: {}]
  %s6 = inlined_call_operand.hbm [shape: f32[2,16,256], index: 6, kind: output, shape index: {}]
  %s7 = sld [smem:[#allocation0]]
  $region42: #{tpu_custom_call.1} parent=0
    _
  %s9 = ssub.s32 1, %s7
  %s10 = scalar_select 0, %s9, %s7
  $region1: #{tpu_custom_call.1} parent=0
    #allocation3 [shape = 'u8[32768]{0}', space=vmem, size = 0x8000, scoped, tag = 'input window, operand 0, single buffered']
    #allocation4 [shape = 's32[1]{0}', space=sflag, size = 0x4, scoped, tag = 'scoped memory for tpu_custom_call.1']
    #allocation5 [shape = 's32[1]{0}', space=sflag, size = 0x4, scoped, tag = 'scoped memory for tpu_custom_call.1']
    #allocation6 [shape = 's32[1]{0}', space=sflag, size = 0x4, scoped, tag = 'scoped memory for tpu_custom_call.1']
    #allocation7 [shape = 'u8[512]{0}', space=smem, size = 0x200, scoped, tag = 'input window, operand 5, single buffered']
    #allocation8 [shape = 'u8[32768]{0}', space=vmem, size = 0x8000, scoped, tag = 'output window, operand 0, single buffered']
    %11 = vsyncpa [#allocation4], 0
    %12 = vsyncpa [#allocation6], 0
    %13 = vsyncpa [#allocation5], 0
    // Predicated region
    $region2: #{tpu_custom_call.1} parent=1 // pred_check
      _
    $region3: #{tpu_custom_call.1} parent=1 // pred_check_branch
      %15 = sbr.rel (0) target = $region5
    $region4: #{tpu_custom_call.1} parent=1 // pred_region
      %s17 = ssub.s32 1024, 1024
      %18 = vsyncadd [#allocation4], %s17
      %s19 = sshll.u32 [#allocation3], 4
      %s20 = int_to_ptr.vmem [resolvable:$true] %s19
      %25 = dma.hbm_to_vmem [thread:$0]  %s0, 1024, %s20, [#allocation4], 256, 256, 16
    $region5: #{tpu_custom_call.1} parent=1 // pred_fallthru
      _
    // Predicated region
    $region6: #{tpu_custom_call.1} parent=1 // pred_check
      _
    $region7: #{tpu_custom_call.1} parent=1 // pred_check_branch
      %27 = sbr.rel (0) target = $region9
    $region8: #{tpu_custom_call.1} parent=1 // pred_region
      _
    $region9: #{tpu_custom_call.1} parent=1 // pred_fallthru
      _
    // Predicated region
    $region10: #{tpu_custom_call.1} parent=1 // pred_check
      _
    $region11: #{tpu_custom_call.1} parent=1 // pred_check_branch
      %29 = sbr.rel (0) target = $region13
    $region12: #{tpu_custom_call.1} parent=1 // pred_region
      _
    $region13: #{tpu_custom_call.1} parent=1 // pred_fallthru
      _
    // Predicated region
    $region14: #{tpu_custom_call.1} parent=1 // pred_check
      _
    $region15: #{tpu_custom_call.1} parent=1 // pred_check_branch
      %31 = sbr.rel (0) target = $region17
    $region16: #{tpu_custom_call.1} parent=1 // pred_region
      _
    $region17: #{tpu_custom_call.1} parent=1 // pred_fallthru
      _
    // Predicated region
    $region18: #{tpu_custom_call.1} parent=1 // pred_check
      _
    $region19: #{tpu_custom_call.1} parent=1 // pred_check_branch
      %33 = sbr.rel (0) target = $region21
    $region20: #{tpu_custom_call.1} parent=1 // pred_region
      _
    $region21: #{tpu_custom_call.1} parent=1 // pred_fallthru
      _
    // Predicated region
    $region22: #{tpu_custom_call.1} parent=1 // pred_check
      _
    $region23: #{tpu_custom_call.1} parent=1 // pred_check_branch
      %35 = sbr.rel (0) target = $region25
    $region24: #{tpu_custom_call.1} parent=1 // pred_region
      %s37 = ssub.s32 16, 16
      %38 = vsyncadd [#allocation6], %s37
      %s40 = sshll.u32 %s5, 4
      %s41 = int_to_ptr.vmem [resolvable:$true] %s40
      %43 = dma.vmem_to_smem %s41, 16, [#allocation7], [#allocation6]
    $region25: #{tpu_custom_call.1} parent=1 // pred_fallthru
      _
    // Predicated region
    $region26: #{tpu_custom_call.1} parent=1 // pred_check
      _
    $region27: #{tpu_custom_call.1} parent=1 // pred_check_branch
      %45 = sbr.rel (0) target = $region29
    $region28: #{tpu_custom_call.1} parent=1 // pred_region
      %46 = dma.done [#allocation4], 1024
    $region29: #{tpu_custom_call.1} parent=1 // pred_fallthru
      _
    // Predicated region
    $region30: #{tpu_custom_call.1} parent=1 // pred_check
      _
    $region31: #{tpu_custom_call.1} parent=1 // pred_check_branch
      %48 = sbr.rel (0) target = $region33
    $region32: #{tpu_custom_call.1} parent=1 // pred_region
      %49 = dma.done [#allocation6], 16
    $region33: #{tpu_custom_call.1} parent=1 // pred_fallthru
      _
    %50 = sfence
    %v51 = vld [vmem:[#allocation3] sm:$0xff]
    %v52 = vld [vmem:[#allocation3 + $0x8] sm:$0xff]
    %v53 = vld [vmem:[#allocation3 + $0x10] sm:$0xff]
    %v54 = vld [vmem:[#allocation3 + $0x18] sm:$0xff]
    %v55 = vld [vmem:[#allocation3 + $0x20] sm:$0xff]
    %v56 = vld [vmem:[#allocation3 + $0x28] sm:$0xff]
    %v57 = vld [vmem:[#allocation3 + $0x30] sm:$0xff]
    %v58 = vld [vmem:[#allocation3 + $0x38] sm:$0xff]
    %v59 = vadd.f32 %v51, %v52
    %60 = vadd.xlane.f32.xlu0 %v59
    %v61 = vpop.xlane.xlu0 %60
    %v62 = vadd.f32 %v53, %v54
    %63 = vadd.xlane.f32.xlu0 %v62
    %v64 = vpop.xlane.xlu0 %63
    %v65 = vadd.f32 %v55, %v56
    %66 = vadd.xlane.f32.xlu0 %v65
    %v67 = vpop.xlane.xlu0 %66
    %v68 = vadd.f32 %v57, %v58
    %69 = vadd.xlane.f32.xlu0 %v68
    %v70 = vpop.xlane.xlu0 %69
    %v71 = vmul.f32 %v61, 0.00390625
    %v72 = vmul.f32 %v64, 0.00390625
    %v73 = vmul.f32 %v67, 0.00390625
    %v74 = vmul.f32 %v70, 0.00390625
    %v75 = vmax.f32 %v51, %v52
    %76 = vmax.xlane.f32.xlu0 %v75
    %v77 = vpop.xlane.xlu0 %76
    %v78 = vmax.f32 %v53, %v54
    %79 = vmax.xlane.f32.xlu0 %v78
    %v80 = vpop.xlane.xlu0 %79
    %v81 = vmax.f32 %v55, %v56
    %82 = vmax.xlane.f32.xlu0 %v81
    %v83 = vpop.xlane.xlu0 %82
    %v84 = vmax.f32 %v57, %v58
    %85 = vmax.xlane.f32.xlu0 %v84
    %v86 = vpop.xlane.xlu0 %85
    %v91 = vlaneseq
    %v92 = vand.u32 %v91, 127
    %v93 = vlaneseq
    %v94 = vshrl.u32 %v93, 7
    %v95 = vsub.s32 %v92, %v94
    %v96 = vrot.slane %v71, %v95
    %v97 = vadd.s32 %v92, 4294967288
    %v98 = vlaneseq
    %v99 = vshrl.u32 %v98, 7
    %v100 = vsub.s32 %v97, %v99
    %v101 = vrot.slane %v72, %v100
    %vm102 = vcmask 130112
    %v103 = vsel %vm102, %v101, %v96
    %v104 = vlaneseq
    %v105 = vshrl.u32 %v104, 7
    %v106 = vsub.s32 %v92, %v105
    %v107 = vrot.slane %v73, %v106
    %v108 = vlaneseq
    %v109 = vshrl.u32 %v108, 7
    %v110 = vsub.s32 %v97, %v109
    %v111 = vrot.slane %v74, %v110
    %v112 = vsel %vm102, %v111, %v107
    %vm113 = vcmask 1041409
    %v114 = vsel %vm113, %v112, %v103
    %v120 = vlaneseq
    %v121 = vshrl.u32 %v120, 7
    %v122 = vsub.s32 %v92, %v121
    %v123 = vrot.slane %v77, %v122
    %v124 = vlaneseq
    %v125 = vshrl.u32 %v124, 7
    %v126 = vsub.s32 %v97, %v125
    %v127 = vrot.slane %v80, %v126
    %v128 = vsel %vm102, %v127, %v123
    %v129 = vlaneseq
    %v130 = vshrl.u32 %v129, 7
    %v131 = vsub.s32 %v92, %v130
    %v132 = vrot.slane %v83, %v131
    %v133 = vlaneseq
    %v134 = vshrl.u32 %v133, 7
    %v135 = vsub.s32 %v97, %v134
    %v136 = vrot.slane %v86, %v135
    %v137 = vsel %vm102, %v136, %v132
    %vm138 = vcmask 1043459
    %v139 = vsel %vm138, %v137, %v128
    %vm141 = vcmask 1041408
    %v142 = vsel %vm141, %v114, %v139
    %v143 = vld [vmem:[%s1] sm:$0xff]
    %v144 = vld [vmem:[%s1 + $0x8] sm:$0xff]
    %v145 = vld [vmem:[%s2] sm:$0x1]
    %v147 = vlaneseq
    %v148 = vshrl.u32 %v147, 7
    %v149 = vsub.s32 0, %v148
    %v150 = vrot.slane %v145, %v149
    %vm152 = vcmask 130048
    %v154 = vsel %vm152, %v142, 0
    %156 = vmatprep.subr.mxu0 0.0
    %157 = vmatpush1.msra.mxu0 0.0
    %158 = vmatprep.subr.mxu0 0.0
    %159 = vmatpush1.msra.mxu0 0.0
    %160 = vmatprep.subr.mxu0 0.0
    %161 = vmatpush1.msra.mxu0 0.0
    %162 = vmatprep.subr.mxu0 0.0
    %163 = vmatpush1.msra.mxu0 0.0
    %164 = vmatprep.subr.mxu0 0.0
    %165 = vmatpush1.msra.mxu0 0.0
    %166 = vmatprep.subr.mxu0 0.0
    %167 = vmatpush1.msra.mxu0 0.0
    %168 = vmatprep.subr.mxu0 0.0
    %169 = vmatpush1.msra.mxu0 0.0
    %170 = vmatprep.subr.mxu0 0.0
    %171 = vmatpush1.msra.mxu0 0.0
    %172 = vmatprep.subr.mxu0 0.0
    %173 = vmatpush1.msra.mxu0 0.0
    %174 = vmatprep.subr.mxu0 0.0
    %175 = vmatpush1.msra.mxu0 0.0
    %176 = vmatprep.subr.mxu0 0.0
    %177 = vmatpush1.msra.mxu0 0.0
    %178 = vmatprep.subr.mxu0 0.0
    %179 = vmatpush1.msra.mxu0 0.0
    %180 = vmatprep.subr.mxu0 0.0
    %181 = vmatpush1.msra.mxu0 0.0
    %182 = vmatprep.subr.mxu0 0.0
    %183 = vmatpush1.msra.mxu0 0.0
    %184 = vmatprep.subr.mxu0 0.0
    %185 = vmatpush1.msra.mxu0 %v144
    %186 = vmatprep.subr.mxu0 0.0
    %187 = vmatpush1.msra.mxu0 %v143
    %188 = vmatprep.subr.mxu0 0.0
    %189 = vmatpush2.msra.mxu0 0.0
    %190 = vmatprep.subr.mxu0 0.0
    %191 = vmatpush2.msra.mxu0 0.0
    %192 = vmatprep.subr.mxu0 0.0
    %193 = vmatpush2.msra.mxu0 0.0
    %194 = vmatprep.subr.mxu0 0.0
    %195 = vmatpush2.msra.mxu0 0.0
    %196 = vmatprep.subr.mxu0 0.0
    %197 = vmatpush2.msra.mxu0 0.0
    %198 = vmatprep.subr.mxu0 0.0
    %199 = vmatpush2.msra.mxu0 0.0
    %200 = vmatprep.subr.mxu0 0.0
    %201 = vmatpush2.msra.mxu0 0.0
    %202 = vmatprep.subr.mxu0 0.0
    %203 = vmatpush2.msra.mxu0 0.0
    %204 = vmatprep.subr.mxu0 0.0
    %205 = vmatpush2.msra.mxu0 0.0
    %206 = vmatprep.subr.mxu0 0.0
    %207 = vmatpush2.msra.mxu0 0.0
    %208 = vmatprep.subr.mxu0 0.0
    %209 = vmatpush2.msra.mxu0 0.0
    %210 = vmatprep.subr.mxu0 0.0
    %211 = vmatpush2.msra.mxu0 0.0
    %212 = vmatprep.subr.mxu0 0.0
    %213 = vmatpush2.msra.mxu0 0.0
    %214 = vmatprep.subr.mxu0 0.0
    %215 = vmatpush2.msra.mxu0 0.0
    %216 = vmatprep.subr.mxu0 0.0
    %217 = vmatpush2.msra.mxu0 0.0
    %218 = vmatprep.subr.mxu0 0.0
    %219 = vmatpush2.msra.mxu0 0.0
    %220 = vmatprep.mubr.f32.mxu0 0.0
    %221 = vmatmul.mubr.f32.gmra.mxu0 %v154
    %v222 = vpop.f32.mrf.mxu0
    %v223 = vadd.f32 %v150, %v222
    %v224 = vpop.f32.mrf.mxu0
    %225 = vdwg.mxu0
    %v226 = vmax.f32 %v223, 0.0
    %v227 = vld [vmem:[%s3] sm:$0x3]
    %v228 = vld [vmem:[%s4] sm:$0x1]
    %v230 = vlaneseq
    %v231 = vshrl.u32 %v230, 7
    %v232 = vsub.s32 0, %v231
    %v233 = vrot.slane %v228, %v232
    %vm235 = vcmask 15360
    %v237 = vsel %vm235, %v226, 0
    %v240 = vsel %vm141, %v227, 0
    %242 = vmatprep.subr.mxu0 0.0
    %243 = vmatpush1.msra.mxu0 0.0
    %244 = vmatprep.subr.mxu0 0.0
    %245 = vmatpush1.msra.mxu0 0.0
    %246 = vmatprep.subr.mxu0 0.0
    %247 = vmatpush1.msra.mxu0 0.0
    %248 = vmatprep.subr.mxu0 0.0
    %249 = vmatpush1.msra.mxu0 0.0
    %250 = vmatprep.subr.mxu0 0.0
    %251 = vmatpush1.msra.mxu0 0.0
    %252 = vmatprep.subr.mxu0 0.0
    %253 = vmatpush1.msra.mxu0 0.0
    %254 = vmatprep.subr.mxu0 0.0
    %255 = vmatpush1.msra.mxu0 0.0
    %256 = vmatprep.subr.mxu0 0.0
    %257 = vmatpush1.msra.mxu0 0.0
    %258 = vmatprep.subr.mxu0 0.0
    %259 = vmatpush1.msra.mxu0 0.0
    %260 = vmatprep.subr.mxu0 0.0
    %261 = vmatpush1.msra.mxu0 0.0
    %262 = vmatprep.subr.mxu0 0.0
    %263 = vmatpush1.msra.mxu0 0.0
    %264 = vmatprep.subr.mxu0 0.0
    %265 = vmatpush1.msra.mxu0 0.0
    %266 = vmatprep.subr.mxu0 0.0
    %267 = vmatpush1.msra.mxu0 0.0
    %268 = vmatprep.subr.mxu0 0.0
    %269 = vmatpush1.msra.mxu0 0.0
    %270 = vmatprep.subr.mxu0 0.0
    %271 = vmatpush1.msra.mxu0 0.0
    %272 = vmatprep.subr.mxu0 0.0
    %273 = vmatpush1.msra.mxu0 %v240
    %274 = vmatprep.subr.mxu0 0.0
    %275 = vmatpush2.msra.mxu0 0.0
    %276 = vmatprep.subr.mxu0 0.0
    %277 = vmatpush2.msra.mxu0 0.0
    %278 = vmatprep.subr.mxu0 0.0
    %279 = vmatpush2.msra.mxu0 0.0
    %280 = vmatprep.subr.mxu0 0.0
    %281 = vmatpush2.msra.mxu0 0.0
    %282 = vmatprep.subr.mxu0 0.0
    %283 = vmatpush2.msra.mxu0 0.0
    %284 = vmatprep.subr.mxu0 0.0
    %285 = vmatpush2.msra.mxu0 0.0
    %286 = vmatprep.subr.mxu0 0.0
    %287 = vmatpush2.msra.mxu0 0.0
    %288 = vmatprep.subr.mxu0 0.0
    %289 = vmatpush2.msra.mxu0 0.0
    %290 = vmatprep.subr.mxu0 0.0
    %291 = vmatpush2.msra.mxu0 0.0
    %292 = vmatprep.subr.mxu0 0.0
    %293 = vmatpush2.msra.mxu0 0.0
    %294 = vmatprep.subr.mxu0 0.0
    %295 = vmatpush2.msra.mxu0 0.0
    %296 = vmatprep.subr.mxu0 0.0
    %297 = vmatpush2.msra.mxu0 0.0
    %298 = vmatprep.subr.mxu0 0.0
    %299 = vmatpush2.msra.mxu0 0.0
    %300 = vmatprep.subr.mxu0 0.0
    %301 = vmatpush2.msra.mxu0 0.0
    %302 = vmatprep.subr.mxu0 0.0
    %303 = vmatpush2.msra.mxu0 0.0
    %304 = vmatprep.subr.mxu0 0.0
    %305 = vmatpush2.msra.mxu0 0.0
    %306 = vmatprep.mubr.f32.mxu0 0.0
    %307 = vmatmul.mubr.f32.gmra.mxu0 %v237
    %v308 = vpop.f32.mrf.mxu0
    %v309 = vadd.f32 %v233, %v308
    %v310 = vpop.f32.mrf.mxu0
    %311 = vdwg.mxu0
    %v313 = vrot.slane %v309, 2
    %v315 = vadd.f32 %v309, %v313
    %v316 = vxor.u32 %v315, 2147483648
    %v317 = vmul.f32 %v316, 1.442695
    %v318 = vpow.pop %v317
    %v319 = vadd.f32 %v318, 1.0
    %v320 = vrcp.pop %v319
    %v321 = vmul.f32 1.0, %v320
    %v322 = vlaneseq
    %v323 = vshrl.u32 %v322, 7
    %v324 = vsub.s32 0, %v323
    %v325 = vrot.slane %v321, %v324
    %327 = vbcast.lane.b32.xlu0 %v325, 256
    %v328 = vpop.permute.xlu0 %327
    %s330 = sor.u32 256, 8
    %331 = vbcast.lane.b32.xlu0 %v325, %s330
    %v332 = vpop.permute.xlu0 %331
    %v333 = vlaneseq
    %v334 = vshrl.u32 %v333, 7
    %v335 = vsub.s32 1, %v334
    %v336 = vrot.slane %v321, %v335
    %338 = vbcast.lane.b32.xlu0 %v336, 256
    %v339 = vpop.permute.xlu0 %338
    %s341 = sor.u32 256, 8
    %342 = vbcast.lane.b32.xlu0 %v336, %s341
    %v343 = vpop.permute.xlu0 %342
    %v344 = vmul.f32 %v51, %v328
    %v345 = vmul.f32 %v52, %v328
    %v346 = vmul.f32 %v53, %v332
    %v347 = vmul.f32 %v54, %v332
    %v348 = vmul.f32 %v55, %v339
    %v349 = vmul.f32 %v56, %v339
    %v350 = vmul.f32 %v57, %v343
    %v351 = vmul.f32 %v58, %v343
    %v352 = vmax.f32 %v344, %v346
    %v353 = vrot.slane %v352, 4
    %v354 = vmax.f32 %v352, %v353
    %v355 = vrot.slane %v354, 2
    %v356 = vmax.f32 %v354, %v355
    %v357 = vrot.slane %v356, 1
    %v358 = vmax.f32 %v356, %v357
    %v359 = vmax.f32 %v345, %v347
    %v360 = vrot.slane %v359, 4
    %v361 = vmax.f32 %v359, %v360
    %v362 = vrot.slane %v361, 2
    %v363 = vmax.f32 %v361, %v362
    %v364 = vrot.slane %v363, 1
    %v365 = vmax.f32 %v363, %v364
    %v366 = vmax.f32 %v348, %v350
    %v367 = vrot.slane %v366, 4
    %v368 = vmax.f32 %v366, %v367
    %v369 = vrot.slane %v368, 2
    %v370 = vmax.f32 %v368, %v369
    %v371 = vrot.slane %v370, 1
    %v372 = vmax.f32 %v370, %v371
    %v373 = vmax.f32 %v349, %v351
    %v374 = vrot.slane %v373, 4
    %v375 = vmax.f32 %v373, %v374
    %v376 = vrot.slane %v375, 2
    %v377 = vmax.f32 %v375, %v376
    %v378 = vrot.slane %v377, 1
    %v379 = vmax.f32 %v377, %v378
    %v380 = vadd.f32 %v344, %v346
    %v381 = vrot.slane %v380, 4
    %v382 = vadd.f32 %v380, %v381
    %v383 = vrot.slane %v382, 2
    %v384 = vadd.f32 %v382, %v383
    %v385 = vrot.slane %v384, 1
    %v386 = vadd.f32 %v384, %v385
    %v387 = vadd.f32 %v345, %v347
    %v388 = vrot.slane %v387, 4
    %v389 = vadd.f32 %v387, %v388
    %v390 = vrot.slane %v389, 2
    %v391 = vadd.f32 %v389, %v390
    %v392 = vrot.slane %v391, 1
    %v393 = vadd.f32 %v391, %v392
    %v394 = vadd.f32 %v348, %v350
    %v395 = vrot.slane %v394, 4
    %v396 = vadd.f32 %v394, %v395
    %v397 = vrot.slane %v396, 2
    %v398 = vadd.f32 %v396, %v397
    %v399 = vrot.slane %v398, 1
    %v400 = vadd.f32 %v398, %v399
    %v401 = vadd.f32 %v349, %v351
    %v402 = vrot.slane %v401, 4
    %v403 = vadd.f32 %v401, %v402
    %v404 = vrot.slane %v403, 2
    %v405 = vadd.f32 %v403, %v404
    %v406 = vrot.slane %v405, 1
    %v407 = vadd.f32 %v405, %v406
    %v408 = vmul.f32 %v386, 0.0625
    %v409 = vmul.f32 %v393, 0.0625
    %v410 = vmul.f32 %v400, 0.0625
    %v411 = vmul.f32 %v407, 0.0625
    %v416 = vsel %vm113, %v372, %v358
    %v417 = vsel %vm113, %v379, %v365
    %v419 = vcombine.low 0.0, %v416
    %v420 = vcombine.low %v417, 0.0
    %v422 = vunpack.c.l.s4 1983009808
    %v423 = vunpack.c.0.s8 %v422
    %v424 = vlaneseq
    %v425 = vshrl.u32 %v424, 7
    %v426 = vsub.s32 %v423, %v425
    %v427 = vrot.slane %v419, %v426
    %v429 = vunpack.c.l.s4 1983009808
    %v430 = vunpack.c.0.s8 %v429
    %v431 = vlaneseq
    %v432 = vshrl.u32 %v431, 7
    %v433 = vsub.s32 %v430, %v432
    %v434 = vrot.slane %v420, %v433
    %v435 = vcombine.low %v427, %v434
    %437 = vst [vmem:[#allocation2] sm:$0xff] %v435
    %v442 = vsel %vm113, %v410, %v408
    %v443 = vsel %vm113, %v411, %v409
    %v444 = vcombine.low 0.0, %v442
    %v445 = vcombine.low %v443, 0.0
    %v447 = vunpack.c.l.s4 1983009808
    %v448 = vunpack.c.0.s8 %v447
    %v449 = vlaneseq
    %v450 = vshrl.u32 %v449, 7
    %v451 = vsub.s32 %v448, %v450
    %v452 = vrot.slane %v444, %v451
    %v454 = vunpack.c.l.s4 1983009808
    %v455 = vunpack.c.0.s8 %v454
    %v456 = vlaneseq
    %v457 = vshrl.u32 %v456, 7
    %v458 = vsub.s32 %v455, %v457
    %v459 = vrot.slane %v445, %v458
    %v460 = vcombine.low %v452, %v459
    %s462 = scalar_lea.vmem [#allocation2], 8
    %463 = vst [vmem:[%s462] sm:$0xff] %v460
    %v464 = vld [vmem:[#allocation2] sm:$0xff]
    %v465 = vld [vmem:[%s462] sm:$0xff]
    %v466 = vadd.s32 %v92, 128
    %vm467 = vcmp.lt.s32.totalorder %v92, 0
    %v468 = vsub.s32 0, %v92
    %v469 = vsel %vm467, %v468, %v92
    %v470 = vshrl.u32 %v469, 4
    %v471 = vand.u32 %v469, 15
    %v472 = vsub.s32 0, %v471
    %v473 = vsel %vm467, %v472, %v471
    %vm474 = vcmp.lt.s32.totalorder %v466, 0
    %v475 = vsub.s32 0, %v466
    %v476 = vsel %vm474, %v475, %v466
    %v477 = vshrl.u32 %v476, 4
    %v478 = vand.u32 %v476, 15
    %v479 = vsub.s32 0, %v478
    %v480 = vsel %vm474, %v479, %v478
    %vm481 = vcmp.ne.s32.totalorder %v473, 0
    %vm482 = vcmp.ne.s32.totalorder %v480, 0
    %vm483 = vcmp.lt.s32.totalorder %v473, 0
    %vm484 = vcmp.lt.s32.totalorder %v480, 0
    %vm485 = vmand %vm483, %vm481
    %vm486 = vmand %vm484, %vm482
    %v487 = vadd.s32 %v473, 16
    %v488 = vadd.s32 %v480, 16
    %v489 = vsel %vm485, %v487, %v473
    %v490 = vsel %vm486, %v488, %v480
    %s491 = sld [smem:[#allocation7]]
    %v492 = vstv %s491
    %v493 = vmul.f32 %v492, %v464
    %v494 = vadd.f32 %v493, 0.0
    %s495 = sld [smem:[#allocation7 + $0x31]]
    %v496 = vstv %s495
    %v497 = vmul.f32 %v496, %v465
    %v498 = vadd.f32 %v494, %v497
    %s499 = sld [smem:[#allocation7 + $0x7]]
    %v500 = vstv %s499
    %v501 = vmul.f32 %v500, %v464
    %503 = vrot.lane.b32.xlu0 %v501, 112
    %v504 = vpop.permute.xlu0 %503
    %v505 = vrot.slane %v504, 2
    %vm506 = vcmask 916480
    %v507 = vsel %vm506, %v504, %v505
    %v509 = vadd.f32 %v498, %v507
    %s510 = sld [smem:[#allocation7 + $0x38]]
    %v511 = vstv %s510
    %v512 = vmul.f32 %v511, %v465
    %514 = vrot.lane.b32.xlu0 %v512, 112
    %v515 = vpop.permute.xlu0 %514
    %v516 = vrot.slane %v515, 2
    %v517 = vsel %vm506, %v515, %v516
    %v519 = vadd.f32 %v509, %v517
    %s520 = sld [smem:[#allocation7 + $0xe]]
    %v521 = vstv %s520
    %v522 = vmul.f32 %v521, %v464
    %524 = vrot.lane.b32.xlu0 %v522, 96
    %v525 = vpop.permute.xlu0 %524
    %v526 = vrot.slane %v525, 2
    %vm527 = vcmask 785408
    %v528 = vsel %vm527, %v525, %v526
    %v530 = vadd.f32 %v519, %v528
    %s531 = sld [smem:[#allocation7 + $0x3f]]
    %v532 = vstv %s531
    %v533 = vmul.f32 %v532, %v465
    %535 = vrot.lane.b32.xlu0 %v533, 96
    %v536 = vpop.permute.xlu0 %535
    %v537 = vrot.slane %v536, 2
    %v538 = vsel %vm527, %v536, %v537
    %v540 = vadd.f32 %v530, %v538
    %s541 = sld [smem:[#allocation7 + $0x15]]
    %v542 = vstv %s541
    %v543 = vmul.f32 %v542, %v464
    %545 = vrot.lane.b32.xlu0 %v543, 80
    %v546 = vpop.permute.xlu0 %545
    %v547 = vrot.slane %v546, 2
    %vm548 = vcmask 654336
    %v549 = vsel %vm548, %v546, %v547
    %v551 = vadd.f32 %v540, %v549
    %s552 = sld [smem:[#allocation7 + $0x46]]
    %v553 = vstv %s552
    %v554 = vmul.f32 %v553, %v465
    %556 = vrot.lane.b32.xlu0 %v554, 80
    %v557 = vpop.permute.xlu0 %556
    %v558 = vrot.slane %v557, 2
    %v559 = vsel %vm548, %v557, %v558
    %v561 = vadd.f32 %v551, %v559
    %s562 = sld [smem:[#allocation7 + $0x1c]]
    %v563 = vstv %s562
    %565 = vrot.lane.b32.xlu0 %v464, 115
    %v566 = vpop.permute.xlu0 %565
    %v567 = vrot.slane %v566, 2
    %v568 = vrot.slane %v566, 4
    %vm569 = vcmask 941056
    %v570 = vsel %vm569, %v567, %v568
    %v572 = vmul.f32 %v563, %v570
    %574 = vrot.lane.b32.xlu0 %v572, 77
    %v575 = vpop.permute.xlu0 %574
    %v576 = vrot.slane %v575, 6
    %vm577 = vcmask 629760
    %v578 = vsel %vm577, %v576, %v575
    %v580 = vadd.f32 %v561, %v578
    %s581 = sld [smem:[#allocation7 + $0x4d]]
    %v582 = vstv %s581
    %584 = vrot.lane.b32.xlu0 %v465, 115
    %v585 = vpop.permute.xlu0 %584
    %v586 = vrot.slane %v585, 2
    %v587 = vrot.slane %v585, 4
    %v588 = vsel %vm569, %v586, %v587
    %v590 = vmul.f32 %v582, %v588
    %592 = vrot.lane.b32.xlu0 %v590, 77
    %v593 = vpop.permute.xlu0 %592
    %v594 = vrot.slane %v593, 6
    %v595 = vsel %vm577, %v594, %v593
    %v597 = vadd.f32 %v580, %v595
    %s598 = sld [smem:[#allocation7 + $0x23]]
    %v599 = vstv %s598
    %600 = vrot.lane.b32.xlu0 %v464, 99
    %v601 = vpop.permute.xlu0 %600
    %v602 = vrot.slane %v601, 2
    %v603 = vrot.slane %v601, 4
    %vm604 = vcmask 809984
    %v605 = vsel %vm604, %v602, %v603
    %v607 = vmul.f32 %v599, %v605
    %609 = vrot.lane.b32.xlu0 %v607, 77
    %v610 = vpop.permute.xlu0 %609
    %v611 = vrot.slane %v610, 6
    %v612 = vsel %vm577, %v611, %v610
    %v614 = vadd.f32 %v597, %v612
    %s615 = sld [smem:[#allocation7 + $0x54]]
    %v616 = vstv %s615
    %617 = vrot.lane.b32.xlu0 %v465, 99
    %v618 = vpop.permute.xlu0 %617
    %v619 = vrot.slane %v618, 2
    %v620 = vrot.slane %v618, 4
    %v621 = vsel %vm604, %v619, %v620
    %v623 = vmul.f32 %v616, %v621
    %625 = vrot.lane.b32.xlu0 %v623, 77
    %v626 = vpop.permute.xlu0 %625
    %v627 = vrot.slane %v626, 6
    %v628 = vsel %vm577, %v627, %v626
    %v630 = vadd.f32 %v614, %v628
    %s631 = sld [smem:[#allocation7 + $0x2a]]
    %v632 = vstv %s631
    %633 = vrot.lane.b32.xlu0 %v464, 83
    %v634 = vpop.permute.xlu0 %633
    %v635 = vrot.slane %v634, 2
    %v636 = vrot.slane %v634, 4
    %vm637 = vcmask 678912
    %v638 = vsel %vm637, %v635, %v636
    %v640 = vmul.f32 %v632, %v638
    %642 = vrot.lane.b32.xlu0 %v640, 77
    %v643 = vpop.permute.xlu0 %642
    %v644 = vrot.slane %v643, 6
    %v645 = vsel %vm577, %v644, %v643
    %v647 = vadd.f32 %v630, %v645
    %s648 = sld [smem:[#allocation7 + $0x5b]]
    %v649 = vstv %s648
    %650 = vrot.lane.b32.xlu0 %v465, 83
    %v651 = vpop.permute.xlu0 %650
    %v652 = vrot.slane %v651, 2
    %v653 = vrot.slane %v651, 4
    %v654 = vsel %vm637, %v652, %v653
    %v656 = vmul.f32 %v649, %v654
    %658 = vrot.lane.b32.xlu0 %v656, 77
    %v659 = vpop.permute.xlu0 %658
    %v660 = vrot.slane %v659, 6
    %v661 = vsel %vm577, %v660, %v659
    %v663 = vadd.f32 %v647, %v661
    %v664 = vadd.s32 %v489, 4294967293
    %v665 = vadd.s32 %v490, 4294967293
    %vm666 = vcmp.ge.s32.totalorder %v664, 0
    %vm667 = vcmp.ge.s32.totalorder %v665, 0
    %vm668 = vcmp.lt.s32.totalorder %v664, 16
    %vm669 = vcmp.lt.s32.totalorder %v665, 16
    %vm670 = vmand %vm666, %vm668
    %vm671 = vmand %vm667, %vm669
    %v672 = vsel %vm670, 1, 0
    %v673 = vsel %vm671, 1, 0
    %vm674 = vcmp.eq.s32.totalorder %v672, 1
    %vm675 = vcmp.eq.s32.totalorder %v673, 1
    %v677 = vcombine.high %v663, %v663
    %v679 = vunpack.c.l.s4 1983009808
    %v680 = vunpack.c.0.s8 %v679
    %v681 = vlaneseq
    %v682 = vshrl.u32 %v681, 7
    %v683 = vsub.s32 %v680, %v682
    %v684 = vrot.slane %v663, %v683
    %v686 = vunpack.c.l.s4 1983009808
    %v687 = vunpack.c.0.s8 %v686
    %v688 = vlaneseq
    %v689 = vshrl.u32 %v688, 7
    %v690 = vsub.s32 %v687, %v689
    %v691 = vrot.slane %v677, %v690
    %v692 = vcombine.high %v684, %v684
    %693 = vrot.lane.b32.xlu0 %v684, 51
    %v694 = vpop.permute.xlu0 %693
    %695 = vrot.lane.b32.xlu0 %v692, 51
    %v696 = vpop.permute.xlu0 %695
    %697 = vrot.lane.b32.xlu0 %v691, 51
    %v698 = vpop.permute.xlu0 %697
    %vm699 = vcmask 416768
    %v700 = vsel %vm699, %v694, %v696
    %v701 = vsel %vm699, %v696, %v698
    %v704 = vsel %vm674, %v700, 0.0
    %v705 = vsel %vm675, %v701, 0.0
    %v706 = vadd.f32 %v704, 0.0
    %v707 = vadd.f32 %v705, 0.0
    %s708 = sld [smem:[#allocation7 + $0x1]]
    %v709 = vstv %s708
    %v710 = vmul.f32 %v709, %v464
    %v711 = vadd.f32 %v710, 0.0
    %s712 = sld [smem:[#allocation7 + $0x32]]
    %v713 = vstv %s712
    %v714 = vmul.f32 %v713, %v465
    %v715 = vadd.f32 %v711, %v714
    %s716 = sld [smem:[#allocation7 + $0x8]]
    %v717 = vstv %s716
    %v718 = vmul.f32 %v717, %v464
    %720 = vrot.lane.b32.xlu0 %v718, 112
    %v721 = vpop.permute.xlu0 %720
    %v722 = vrot.slane %v721, 2
    %v723 = vsel %vm506, %v721, %v722
    %v725 = vadd.f32 %v715, %v723
    %s726 = sld [smem:[#allocation7 + $0x39]]
    %v727 = vstv %s726
    %v728 = vmul.f32 %v727, %v465
    %730 = vrot.lane.b32.xlu0 %v728, 112
    %v731 = vpop.permute.xlu0 %730
    %v732 = vrot.slane %v731, 2
    %v733 = vsel %vm506, %v731, %v732
    %v735 = vadd.f32 %v725, %v733
    %s736 = sld [smem:[#allocation7 + $0xf]]
    %v737 = vstv %s736
    %v738 = vmul.f32 %v737, %v464
    %740 = vrot.lane.b32.xlu0 %v738, 96
    %v741 = vpop.permute.xlu0 %740
    %v742 = vrot.slane %v741, 2
    %v743 = vsel %vm527, %v741, %v742
    %v745 = vadd.f32 %v735, %v743
    %s746 = sld [smem:[#allocation7 + $0x40]]
    %v747 = vstv %s746
    %v748 = vmul.f32 %v747, %v465
    %750 = vrot.lane.b32.xlu0 %v748, 96
    %v751 = vpop.permute.xlu0 %750
    %v752 = vrot.slane %v751, 2
    %v753 = vsel %vm527, %v751, %v752
    %v755 = vadd.f32 %v745, %v753
    %s756 = sld [smem:[#allocation7 + $0x16]]
    %v757 = vstv %s756
    %v758 = vmul.f32 %v757, %v464
    %760 = vrot.lane.b32.xlu0 %v758, 80
    %v761 = vpop.permute.xlu0 %760
    %v762 = vrot.slane %v761, 2
    %v763 = vsel %vm548, %v761, %v762
    %v765 = vadd.f32 %v755, %v763
    %s766 = sld [smem:[#allocation7 + $0x47]]
    %v767 = vstv %s766
    %v768 = vmul.f32 %v767, %v465
    %770 = vrot.lane.b32.xlu0 %v768, 80
    %v771 = vpop.permute.xlu0 %770
    %v772 = vrot.slane %v771, 2
    %v773 = vsel %vm548, %v771, %v772
    %v775 = vadd.f32 %v765, %v773
    %s776 = sld [smem:[#allocation7 + $0x1d]]
    %v777 = vstv %s776
    %778 = vrot.lane.b32.xlu0 %v464, 114
    %v779 = vpop.permute.xlu0 %778
    %v780 = vrot.slane %v779, 2
    %v781 = vrot.slane %v779, 4
    %vm782 = vcmask 932864
    %v783 = vsel %vm782, %v780, %v781
    %v785 = vmul.f32 %v777, %v783
    %787 = vrot.lane.b32.xlu0 %v785, 78
    %v788 = vpop.permute.xlu0 %787
    %v789 = vrot.slane %v788, 6
    %vm790 = vcmask 637952
    %v791 = vsel %vm790, %v789, %v788
    %v793 = vadd.f32 %v775, %v791
    %s794 = sld [smem:[#allocation7 + $0x4e]]
    %v795 = vstv %s794
    %796 = vrot.lane.b32.xlu0 %v465, 114
    %v797 = vpop.permute.xlu0 %796
    %v798 = vrot.slane %v797, 2
    %v799 = vrot.slane %v797, 4
    %v800 = vsel %vm782, %v798, %v799
    %v802 = vmul.f32 %v795, %v800
    %804 = vrot.lane.b32.xlu0 %v802, 78
    %v805 = vpop.permute.xlu0 %804
    %v806 = vrot.slane %v805, 6
    %v807 = vsel %vm790, %v806, %v805
    %v809 = vadd.f32 %v793, %v807
    %s810 = sld [smem:[#allocation7 + $0x24]]
    %v811 = vstv %s810
    %812 = vrot.lane.b32.xlu0 %v464, 98
    %v813 = vpop.permute.xlu0 %812
    %v814 = vrot.slane %v813, 2
    %v815 = vrot.slane %v813, 4
    %vm816 = vcmask 801792
    %v817 = vsel %vm816, %v814, %v815
    %v819 = vmul.f32 %v811, %v817
    %821 = vrot.lane.b32.xlu0 %v819, 78
    %v822 = vpop.permute.xlu0 %821
    %v823 = vrot.slane %v822, 6
    %v824 = vsel %vm790, %v823, %v822
    %v826 = vadd.f32 %v809, %v824
    %s827 = sld [smem:[#allocation7 + $0x55]]
    %v828 = vstv %s827
    %829 = vrot.lane.b32.xlu0 %v465, 98
    %v830 = vpop.permute.xlu0 %829
    %v831 = vrot.slane %v830, 2
    %v832 = vrot.slane %v830, 4
    %v833 = vsel %vm816, %v831, %v832
    %v835 = vmul.f32 %v828, %v833
    %837 = vrot.lane.b32.xlu0 %v835, 78
    %v838 = vpop.permute.xlu0 %837
    %v839 = vrot.slane %v838, 6
    %v840 = vsel %vm790, %v839, %v838
    %v842 = vadd.f32 %v826, %v840
    %s843 = sld [smem:[#allocation7 + $0x2b]]
    %v844 = vstv %s843
    %845 = vrot.lane.b32.xlu0 %v464, 82
    %v846 = vpop.permute.xlu0 %845
    %v847 = vrot.slane %v846, 2
    %v848 = vrot.slane %v846, 4
    %vm849 = vcmask 670720
    %v850 = vsel %vm849, %v847, %v848
    %v852 = vmul.f32 %v844, %v850
    %854 = vrot.lane.b32.xlu0 %v852, 78
    %v855 = vpop.permute.xlu0 %854
    %v856 = vrot.slane %v855, 6
    %v857 = vsel %vm790, %v856, %v855
    %v859 = vadd.f32 %v842, %v857
    %s860 = sld [smem:[#allocation7 + $0x5c]]
    %v861 = vstv %s860
    %862 = vrot.lane.b32.xlu0 %v465, 82
    %v863 = vpop.permute.xlu0 %862
    %v864 = vrot.slane %v863, 2
    %v865 = vrot.slane %v863, 4
    %v866 = vsel %vm849, %v864, %v865
    %v868 = vmul.f32 %v861, %v866
    %870 = vrot.lane.b32.xlu0 %v868, 78
    %v871 = vpop.permute.xlu0 %870
    %v872 = vrot.slane %v871, 6
    %v873 = vsel %vm790, %v872, %v871
    %v875 = vadd.f32 %v859, %v873
    %v876 = vadd.s32 %v489, 4294967294
    %v877 = vadd.s32 %v490, 4294967294
    %vm878 = vcmp.ge.s32.totalorder %v876, 0
    %vm879 = vcmp.ge.s32.totalorder %v877, 0
    %vm880 = vcmp.lt.s32.totalorder %v876, 16
    %vm881 = vcmp.lt.s32.totalorder %v877, 16
    %vm882 = vmand %vm878, %vm880
    %vm883 = vmand %vm879, %vm881
    %v884 = vsel %vm882, 1, 0
    %v885 = vsel %vm883, 1, 0
    %vm886 = vcmp.eq.s32.totalorder %v884, 1
    %vm887 = vcmp.eq.s32.totalorder %v885, 1
    %v889 = vcombine.high %v875, %v875
    %v891 = vunpack.c.l.s4 1983009808
    %v892 = vunpack.c.0.s8 %v891
    %v893 = vlaneseq
    %v894 = vshrl.u32 %v893, 7
    %v895 = vsub.s32 %v892, %v894
    %v896 = vrot.slane %v875, %v895
    %v898 = vunpack.c.l.s4 1983009808
    %v899 = vunpack.c.0.s8 %v898
    %v900 = vlaneseq
    %v901 = vshrl.u32 %v900, 7
    %v902 = vsub.s32 %v899, %v901
    %v903 = vrot.slane %v889, %v902
    %v904 = vcombine.high %v896, %v896
    %905 = vrot.lane.b32.xlu0 %v896, 50
    %v906 = vpop.permute.xlu0 %905
    %907 = vrot.lane.b32.xlu0 %v904, 50
    %v908 = vpop.permute.xlu0 %907
    %909 = vrot.lane.b32.xlu0 %v903, 50
    %v910 = vpop.permute.xlu0 %909
    %vm911 = vcmask 408576
    %v912 = vsel %vm911, %v906, %v908
    %v913 = vsel %vm911, %v908, %v910
    %v916 = vsel %vm886, %v912, 0.0
    %v917 = vsel %vm887, %v913, 0.0
    %v918 = vadd.f32 %v706, %v916
    %v919 = vadd.f32 %v707, %v917
    %s920 = sld [smem:[#allocation7 + $0x2]]
    %v921 = vstv %s920
    %v922 = vmul.f32 %v921, %v464
    %v923 = vadd.f32 %v922, 0.0
    %s924 = sld [smem:[#allocation7 + $0x33]]
    %v925 = vstv %s924
    %v926 = vmul.f32 %v925, %v465
    %v927 = vadd.f32 %v923, %v926
    %s928 = sld [smem:[#allocation7 + $0x9]]
    %v929 = vstv %s928
    %v930 = vmul.f32 %v929, %v464
    %932 = vrot.lane.b32.xlu0 %v930, 112
    %v933 = vpop.permute.xlu0 %932
    %v934 = vrot.slane %v933, 2
    %v935 = vsel %vm506, %v933, %v934
    %v937 = vadd.f32 %v927, %v935
    %s938 = sld [smem:[#allocation7 + $0x3a]]
    %v939 = vstv %s938
    %v940 = vmul.f32 %v939, %v465
    %942 = vrot.lane.b32.xlu0 %v940, 112
    %v943 = vpop.permute.xlu0 %942
    %v944 = vrot.slane %v943, 2
    %v945 = vsel %vm506, %v943, %v944
    %v947 = vadd.f32 %v937, %v945
    %s948 = sld [smem:[#allocation7 + $0x10]]
    %v949 = vstv %s948
    %v950 = vmul.f32 %v949, %v464
    %952 = vrot.lane.b32.xlu0 %v950, 96
    %v953 = vpop.permute.xlu0 %952
    %v954 = vrot.slane %v953, 2
    %v955 = vsel %vm527, %v953, %v954
    %v957 = vadd.f32 %v947, %v955
    %s958 = sld [smem:[#allocation7 + $0x41]]
    %v959 = vstv %s958
    %v960 = vmul.f32 %v959, %v465
    %962 = vrot.lane.b32.xlu0 %v960, 96
    %v963 = vpop.permute.xlu0 %962
    %v964 = vrot.slane %v963, 2
    %v965 = vsel %vm527, %v963, %v964
    %v967 = vadd.f32 %v957, %v965
    %s968 = sld [smem:[#allocation7 + $0x17]]
    %v969 = vstv %s968
    %v970 = vmul.f32 %v969, %v464
    %972 = vrot.lane.b32.xlu0 %v970, 80
    %v973 = vpop.permute.xlu0 %972
    %v974 = vrot.slane %v973, 2
    %v975 = vsel %vm548, %v973, %v974
    %v977 = vadd.f32 %v967, %v975
    %s978 = sld [smem:[#allocation7 + $0x48]]
    %v979 = vstv %s978
    %v980 = vmul.f32 %v979, %v465
    %982 = vrot.lane.b32.xlu0 %v980, 80
    %v983 = vpop.permute.xlu0 %982
    %v984 = vrot.slane %v983, 2
    %v985 = vsel %vm548, %v983, %v984
    %v987 = vadd.f32 %v977, %v985
    %s988 = sld [smem:[#allocation7 + $0x1e]]
    %v989 = vstv %s988
    %990 = vrot.lane.b32.xlu0 %v464, 113
    %v991 = vpop.permute.xlu0 %990
    %v992 = vrot.slane %v991, 2
    %v993 = vrot.slane %v991, 4
    %vm994 = vcmask 924672
    %v995 = vsel %vm994, %v992, %v993
    %v997 = vmul.f32 %v989, %v995
    %999 = vrot.lane.b32.xlu0 %v997, 79
    %v1000 = vpop.permute.xlu0 %999
    %v1001 = vrot.slane %v1000, 6
    %vm1002 = vcmask 646144
    %v1003 = vsel %vm1002, %v1001, %v1000
    %v1005 = vadd.f32 %v987, %v1003
    %s1006 = sld [smem:[#allocation7 + $0x4f]]
    %v1007 = vstv %s1006
    %1008 = vrot.lane.b32.xlu0 %v465, 113
    %v1009 = vpop.permute.xlu0 %1008
    %v1010 = vrot.slane %v1009, 2
    %v1011 = vrot.slane %v1009, 4
    %v1012 = vsel %vm994, %v1010, %v1011
    %v1014 = vmul.f32 %v1007, %v1012
    %1016 = vrot.lane.b32.xlu0 %v1014, 79
    %v1017 = vpop.permute.xlu0 %1016
    %v1018 = vrot.slane %v1017, 6
    %v1019 = vsel %vm1002, %v1018, %v1017
    %v1021 = vadd.f32 %v1005, %v1019
    %s1022 = sld [smem:[#allocation7 + $0x25]]
    %v1023 = vstv %s1022
    %1024 = vrot.lane.b32.xlu0 %v464, 97
    %v1025 = vpop.permute.xlu0 %1024
    %v1026 = vrot.slane %v1025, 2
    %v1027 = vrot.slane %v1025, 4
    %vm1028 = vcmask 793600
    %v1029 = vsel %vm1028, %v1026, %v1027
    %v1031 = vmul.f32 %v1023, %v1029
    %1033 = vrot.lane.b32.xlu0 %v1031, 79
    %v1034 = vpop.permute.xlu0 %1033
    %v1035 = vrot.slane %v1034, 6
    %v1036 = vsel %vm1002, %v1035, %v1034
    %v1038 = vadd.f32 %v1021, %v1036
    %s1039 = sld [smem:[#allocation7 + $0x56]]
    %v1040 = vstv %s1039
    %1041 = vrot.lane.b32.xlu0 %v465, 97
    %v1042 = vpop.permute.xlu0 %1041
    %v1043 = vrot.slane %v1042, 2
    %v1044 = vrot.slane %v1042, 4
    %v1045 = vsel %vm1028, %v1043, %v1044
    %v1047 = vmul.f32 %v1040, %v1045
    %1049 = vrot.lane.b32.xlu0 %v1047, 79
    %v1050 = vpop.permute.xlu0 %1049
    %v1051 = vrot.slane %v1050, 6
    %v1052 = vsel %vm1002, %v1051, %v1050
    %v1054 = vadd.f32 %v1038, %v1052
    %s1055 = sld [smem:[#allocation7 + $0x2c]]
    %v1056 = vstv %s1055
    %1057 = vrot.lane.b32.xlu0 %v464, 81
    %v1058 = vpop.permute.xlu0 %1057
    %v1059 = vrot.slane %v1058, 2
    %v1060 = vrot.slane %v1058, 4
    %vm1061 = vcmask 662528
    %v1062 = vsel %vm1061, %v1059, %v1060
    %v1064 = vmul.f32 %v1056, %v1062
    %1066 = vrot.lane.b32.xlu0 %v1064, 79
    %v1067 = vpop.permute.xlu0 %1066
    %v1068 = vrot.slane %v1067, 6
    %v1069 = vsel %vm1002, %v1068, %v1067
    %v1071 = vadd.f32 %v1054, %v1069
    %s1072 = sld [smem:[#allocation7 + $0x5d]]
    %v1073 = vstv %s1072
    %1074 = vrot.lane.b32.xlu0 %v465, 81
    %v1075 = vpop.permute.xlu0 %1074
    %v1076 = vrot.slane %v1075, 2
    %v1077 = vrot.slane %v1075, 4
    %v1078 = vsel %vm1061, %v1076, %v1077
    %v1080 = vmul.f32 %v1073, %v1078
    %1082 = vrot.lane.b32.xlu0 %v1080, 79
    %v1083 = vpop.permute.xlu0 %1082
    %v1084 = vrot.slane %v1083, 6
    %v1085 = vsel %vm1002, %v1084, %v1083
    %v1087 = vadd.f32 %v1071, %v1085
    %v1088 = vadd.s32 %v489, 4294967295
    %v1089 = vadd.s32 %v490, 4294967295
    %vm1090 = vcmp.ge.s32.totalorder %v1088, 0
    %vm1091 = vcmp.ge.s32.totalorder %v1089, 0
    %vm1092 = vcmp.lt.s32.totalorder %v1088, 16
    %vm1093 = vcmp.lt.s32.totalorder %v1089, 16
    %vm1094 = vmand %vm1090, %vm1092
    %vm1095 = vmand %vm1091, %vm1093
    %v1096 = vsel %vm1094, 1, 0
    %v1097 = vsel %vm1095, 1, 0
    %vm1098 = vcmp.eq.s32.totalorder %v1096, 1
    %vm1099 = vcmp.eq.s32.totalorder %v1097, 1
    %v1101 = vcombine.high %v1087, %v1087
    %v1103 = vunpack.c.l.s4 1983009808
    %v1104 = vunpack.c.0.s8 %v1103
    %v1105 = vlaneseq
    %v1106 = vshrl.u32 %v1105, 7
    %v1107 = vsub.s32 %v1104, %v1106
    %v1108 = vrot.slane %v1087, %v1107
    %v1110 = vunpack.c.l.s4 1983009808
    %v1111 = vunpack.c.0.s8 %v1110
    %v1112 = vlaneseq
    %v1113 = vshrl.u32 %v1112, 7
    %v1114 = vsub.s32 %v1111, %v1113
    %v1115 = vrot.slane %v1101, %v1114
    %v1116 = vcombine.high %v1108, %v1108
    %1117 = vrot.lane.b32.xlu0 %v1108, 49
    %v1118 = vpop.permute.xlu0 %1117
    %1119 = vrot.lane.b32.xlu0 %v1116, 49
    %v1120 = vpop.permute.xlu0 %1119
    %1121 = vrot.lane.b32.xlu0 %v1115, 49
    %v1122 = vpop.permute.xlu0 %1121
    %vm1123 = vcmask 400384
    %v1124 = vsel %vm1123, %v1118, %v1120
    %v1125 = vsel %vm1123, %v1120, %v1122
    %v1128 = vsel %vm1098, %v1124, 0.0
    %v1129 = vsel %vm1099, %v1125, 0.0
    %v1130 = vadd.f32 %v918, %v1128
    %v1131 = vadd.f32 %v919, %v1129
    %s1132 = sld [smem:[#allocation7 + $0x3]]
    %v1133 = vstv %s1132
    %v1134 = vmul.f32 %v1133, %v464
    %v1135 = vadd.f32 %v1134, 0.0
    %s1136 = sld [smem:[#allocation7 + $0x34]]
    %v1137 = vstv %s1136
    %v1138 = vmul.f32 %v1137, %v465
    %v1139 = vadd.f32 %v1135, %v1138
    %s1140 = sld [smem:[#allocation7 + $0xa]]
    %v1141 = vstv %s1140
    %v1142 = vmul.f32 %v1141, %v464
    %1144 = vrot.lane.b32.xlu0 %v1142, 112
    %v1145 = vpop.permute.xlu0 %1144
    %v1146 = vrot.slane %v1145, 2
    %v1147 = vsel %vm506, %v1145, %v1146
    %v1149 = vadd.f32 %v1139, %v1147
    %s1150 = sld [smem:[#allocation7 + $0x3b]]
    %v1151 = vstv %s1150
    %v1152 = vmul.f32 %v1151, %v465
    %1154 = vrot.lane.b32.xlu0 %v1152, 112
    %v1155 = vpop.permute.xlu0 %1154
    %v1156 = vrot.slane %v1155, 2
    %v1157 = vsel %vm506, %v1155, %v1156
    %v1159 = vadd.f32 %v1149, %v1157
    %s1160 = sld [smem:[#allocation7 + $0x11]]
    %v1161 = vstv %s1160
    %v1162 = vmul.f32 %v1161, %v464
    %1164 = vrot.lane.b32.xlu0 %v1162, 96
    %v1165 = vpop.permute.xlu0 %1164
    %v1166 = vrot.slane %v1165, 2
    %v1167 = vsel %vm527, %v1165, %v1166
    %v1169 = vadd.f32 %v1159, %v1167
    %s1170 = sld [smem:[#allocation7 + $0x42]]
    %v1171 = vstv %s1170
    %v1172 = vmul.f32 %v1171, %v465
    %1174 = vrot.lane.b32.xlu0 %v1172, 96
    %v1175 = vpop.permute.xlu0 %1174
    %v1176 = vrot.slane %v1175, 2
    %v1177 = vsel %vm527, %v1175, %v1176
    %v1179 = vadd.f32 %v1169, %v1177
    %s1180 = sld [smem:[#allocation7 + $0x18]]
    %v1181 = vstv %s1180
    %v1182 = vrot.slane %v464, 2
    %v1184 = vmul.f32 %v1181, %v1182
    %1186 = vrot.lane.b32.xlu0 %v1184, 80
    %v1187 = vpop.permute.xlu0 %1186
    %v1188 = vrot.slane %v1187, 6
    %v1189 = vsel %vm548, %v1188, %v1187
    %v1191 = vadd.f32 %v1179, %v1189
    %s1192 = sld [smem:[#allocation7 + $0x49]]
    %v1193 = vstv %s1192
    %v1194 = vrot.slane %v465, 2
    %v1196 = vmul.f32 %v1193, %v1194
    %1198 = vrot.lane.b32.xlu0 %v1196, 80
    %v1199 = vpop.permute.xlu0 %1198
    %v1200 = vrot.slane %v1199, 6
    %v1201 = vsel %vm548, %v1200, %v1199
    %v1203 = vadd.f32 %v1191, %v1201
    %s1204 = sld [smem:[#allocation7 + $0x1f]]
    %v1205 = vstv %s1204
    %1206 = vrot.lane.b32.xlu0 %v464, 112
    %v1207 = vpop.permute.xlu0 %1206
    %v1208 = vrot.slane %v1207, 2
    %v1209 = vrot.slane %v1207, 4
    %v1210 = vsel %vm506, %v1208, %v1209
    %v1212 = vmul.f32 %v1205, %v1210
    %1214 = vrot.lane.b32.xlu0 %v1212, 80
    %v1215 = vpop.permute.xlu0 %1214
    %v1216 = vrot.slane %v1215, 6
    %v1217 = vsel %vm548, %v1216, %v1215
    %v1219 = vadd.f32 %v1203, %v1217
    %s1220 = sld [smem:[#allocation7 + $0x50]]
    %v1221 = vstv %s1220
    %1222 = vrot.lane.b32.xlu0 %v465, 112
    %v1223 = vpop.permute.xlu0 %1222
    %v1224 = vrot.slane %v1223, 2
    %v1225 = vrot.slane %v1223, 4
    %v1226 = vsel %vm506, %v1224, %v1225
    %v1228 = vmul.f32 %v1221, %v1226
    %1230 = vrot.lane.b32.xlu0 %v1228, 80
    %v1231 = vpop.permute.xlu0 %1230
    %v1232 = vrot.slane %v1231, 6
    %v1233 = vsel %vm548, %v1232, %v1231
    %v1235 = vadd.f32 %v1219, %v1233
    %s1236 = sld [smem:[#allocation7 + $0x26]]
    %v1237 = vstv %s1236
    %1238 = vrot.lane.b32.xlu0 %v464, 96
    %v1239 = vpop.permute.xlu0 %1238
    %v1240 = vrot.slane %v1239, 2
    %v1241 = vrot.slane %v1239, 4
    %v1242 = vsel %vm527, %v1240, %v1241
    %v1244 = vmul.f32 %v1237, %v1242
    %1246 = vrot.lane.b32.xlu0 %v1244, 80
    %v1247 = vpop.permute.xlu0 %1246
    %v1248 = vrot.slane %v1247, 6
    %v1249 = vsel %vm548, %v1248, %v1247
    %v1251 = vadd.f32 %v1235, %v1249
    %s1252 = sld [smem:[#allocation7 + $0x57]]
    %v1253 = vstv %s1252
    %1254 = vrot.lane.b32.xlu0 %v465, 96
    %v1255 = vpop.permute.xlu0 %1254
    %v1256 = vrot.slane %v1255, 2
    %v1257 = vrot.slane %v1255, 4
    %v1258 = vsel %vm527, %v1256, %v1257
    %v1260 = vmul.f32 %v1253, %v1258
    %1262 = vrot.lane.b32.xlu0 %v1260, 80
    %v1263 = vpop.permute.xlu0 %1262
    %v1264 = vrot.slane %v1263, 6
    %v1265 = vsel %vm548, %v1264, %v1263
    %v1267 = vadd.f32 %v1251, %v1265
    %s1268 = sld [smem:[#allocation7 + $0x2d]]
    %v1269 = vstv %s1268
    %1270 = vrot.lane.b32.xlu0 %v464, 80
    %v1271 = vpop.permute.xlu0 %1270
    %v1272 = vrot.slane %v1271, 2
    %v1273 = vrot.slane %v1271, 4
    %v1274 = vsel %vm548, %v1272, %v1273
    %v1276 = vmul.f32 %v1269, %v1274
    %1278 = vrot.lane.b32.xlu0 %v1276, 80
    %v1279 = vpop.permute.xlu0 %1278
    %v1280 = vrot.slane %v1279, 6
    %v1281 = vsel %vm548, %v1280, %v1279
    %v1283 = vadd.f32 %v1267, %v1281
    %s1284 = sld [smem:[#allocation7 + $0x5e]]
    %v1285 = vstv %s1284
    %1286 = vrot.lane.b32.xlu0 %v465, 80
    %v1287 = vpop.permute.xlu0 %1286
    %v1288 = vrot.slane %v1287, 2
    %v1289 = vrot.slane %v1287, 4
    %v1290 = vsel %vm548, %v1288, %v1289
    %v1292 = vmul.f32 %v1285, %v1290
    %1294 = vrot.lane.b32.xlu0 %v1292, 80
    %v1295 = vpop.permute.xlu0 %1294
    %v1296 = vrot.slane %v1295, 6
    %v1297 = vsel %vm548, %v1296, %v1295
    %v1299 = vadd.f32 %v1283, %v1297
    %vm1300 = vcmp.ge.s32.totalorder %v489, 0
    %vm1301 = vcmp.ge.s32.totalorder %v490, 0
    %vm1302 = vcmp.lt.s32.totalorder %v489, 16
    %vm1303 = vcmp.lt.s32.totalorder %v490, 16
    %vm1304 = vmand %vm1300, %vm1302
    %vm1305 = vmand %vm1301, %vm1303
    %v1306 = vsel %vm1304, 1, 0
    %v1307 = vsel %vm1305, 1, 0
    %vm1308 = vcmp.eq.s32.totalorder %v1306, 1
    %vm1309 = vcmp.eq.s32.totalorder %v1307, 1
    %v1311 = vcombine.high %v1299, %v1299
    %v1313 = vunpack.c.l.s4 1983009808
    %v1314 = vunpack.c.0.s8 %v1313
    %v1315 = vlaneseq
    %v1316 = vshrl.u32 %v1315, 7
    %v1317 = vsub.s32 %v1314, %v1316
    %v1318 = vrot.slane %v1299, %v1317
    %v1320 = vunpack.c.l.s4 1983009808
    %v1321 = vunpack.c.0.s8 %v1320
    %v1322 = vlaneseq
    %v1323 = vshrl.u32 %v1322, 7
    %v1324 = vsub.s32 %v1321, %v1323
    %v1325 = vrot.slane %v1311, %v1324
    %v1326 = vcombine.high %v1318, %v1318
    %1327 = vrot.lane.b32.xlu0 %v1318, 48
    %v1328 = vpop.permute.xlu0 %1327
    %1329 = vrot.lane.b32.xlu0 %v1326, 48
    %v1330 = vpop.permute.xlu0 %1329
    %1331 = vrot.lane.b32.xlu0 %v1325, 48
    %v1332 = vpop.permute.xlu0 %1331
    %vm1333 = vcmask 392192
    %v1334 = vsel %vm1333, %v1328, %v1330
    %v1335 = vsel %vm1333, %v1330, %v1332
    %v1338 = vsel %vm1308, %v1334, 0.0
    %v1339 = vsel %vm1309, %v1335, 0.0
    %v1340 = vadd.f32 %v1130, %v1338
    %v1341 = vadd.f32 %v1131, %v1339
    %s1342 = sld [smem:[#allocation7 + $0x4]]
    %v1343 = vstv %s1342
    %v1344 = vmul.f32 %v1343, %v464
    %v1345 = vadd.f32 %v1344, 0.0
    %s1346 = sld [smem:[#allocation7 + $0x35]]
    %v1347 = vstv %s1346
    %v1348 = vmul.f32 %v1347, %v465
    %v1349 = vadd.f32 %v1345, %v1348
    %s1350 = sld [smem:[#allocation7 + $0xb]]
    %v1351 = vstv %s1350
    %v1352 = vmul.f32 %v1351, %v464
    %1354 = vrot.lane.b32.xlu0 %v1352, 112
    %v1355 = vpop.permute.xlu0 %1354
    %v1356 = vrot.slane %v1355, 2
    %v1357 = vsel %vm506, %v1355, %v1356
    %v1359 = vadd.f32 %v1349, %v1357
    %s1360 = sld [smem:[#allocation7 + $0x3c]]
    %v1361 = vstv %s1360
    %v1362 = vmul.f32 %v1361, %v465
    %1364 = vrot.lane.b32.xlu0 %v1362, 112
    %v1365 = vpop.permute.xlu0 %1364
    %v1366 = vrot.slane %v1365, 2
    %v1367 = vsel %vm506, %v1365, %v1366
    %v1369 = vadd.f32 %v1359, %v1367
    %s1370 = sld [smem:[#allocation7 + $0x12]]
    %v1371 = vstv %s1370
    %v1372 = vmul.f32 %v1371, %v464
    %1374 = vrot.lane.b32.xlu0 %v1372, 96
    %v1375 = vpop.permute.xlu0 %1374
    %v1376 = vrot.slane %v1375, 2
    %v1377 = vsel %vm527, %v1375, %v1376
    %v1379 = vadd.f32 %v1369, %v1377
    %s1380 = sld [smem:[#allocation7 + $0x43]]
    %v1381 = vstv %s1380
    %v1382 = vmul.f32 %v1381, %v465
    %1384 = vrot.lane.b32.xlu0 %v1382, 96
    %v1385 = vpop.permute.xlu0 %1384
    %v1386 = vrot.slane %v1385, 2
    %v1387 = vsel %vm527, %v1385, %v1386
    %v1389 = vadd.f32 %v1379, %v1387
    %s1390 = sld [smem:[#allocation7 + $0x19]]
    %v1391 = vstv %s1390
    %1392 = vrot.lane.b32.xlu0 %v464, 127
    %v1393 = vpop.permute.xlu0 %1392
    %v1394 = vrot.slane %v1393, 2
    %v1395 = vrot.slane %v1393, 4
    %vm1396 = vcmask 1039360
    %v1397 = vsel %vm1396, %v1394, %v1395
    %v1399 = vmul.f32 %v1391, %v1397
    %1401 = vrot.lane.b32.xlu0 %v1399, 81
    %v1402 = vpop.permute.xlu0 %1401
    %v1403 = vrot.slane %v1402, 6
    %v1404 = vsel %vm1061, %v1403, %v1402
    %v1406 = vadd.f32 %v1389, %v1404
    %s1407 = sld [smem:[#allocation7 + $0x4a]]
    %v1408 = vstv %s1407
    %1409 = vrot.lane.b32.xlu0 %v465, 127
    %v1410 = vpop.permute.xlu0 %1409
    %v1411 = vrot.slane %v1410, 2
    %v1412 = vrot.slane %v1410, 4
    %v1413 = vsel %vm1396, %v1411, %v1412
    %v1415 = vmul.f32 %v1408, %v1413
    %1417 = vrot.lane.b32.xlu0 %v1415, 81
    %v1418 = vpop.permute.xlu0 %1417
    %v1419 = vrot.slane %v1418, 6
    %v1420 = vsel %vm1061, %v1419, %v1418
    %v1422 = vadd.f32 %v1406, %v1420
    %s1423 = sld [smem:[#allocation7 + $0x20]]
    %v1424 = vstv %s1423
    %1425 = vrot.lane.b32.xlu0 %v464, 111
    %v1426 = vpop.permute.xlu0 %1425
    %v1427 = vrot.slane %v1426, 2
    %v1428 = vrot.slane %v1426, 4
    %vm1429 = vcmask 908288
    %v1430 = vsel %vm1429, %v1427, %v1428
    %v1432 = vmul.f32 %v1424, %v1430
    %1434 = vrot.lane.b32.xlu0 %v1432, 81
    %v1435 = vpop.permute.xlu0 %1434
    %v1436 = vrot.slane %v1435, 6
    %v1437 = vsel %vm1061, %v1436, %v1435
    %v1439 = vadd.f32 %v1422, %v1437
    %s1440 = sld [smem:[#allocation7 + $0x51]]
    %v1441 = vstv %s1440
    %1442 = vrot.lane.b32.xlu0 %v465, 111
    %v1443 = vpop.permute.xlu0 %1442
    %v1444 = vrot.slane %v1443, 2
    %v1445 = vrot.slane %v1443, 4
    %v1446 = vsel %vm1429, %v1444, %v1445
    %v1448 = vmul.f32 %v1441, %v1446
    %1450 = vrot.lane.b32.xlu0 %v1448, 81
    %v1451 = vpop.permute.xlu0 %1450
    %v1452 = vrot.slane %v1451, 6
    %v1453 = vsel %vm1061, %v1452, %v1451
    %v1455 = vadd.f32 %v1439, %v1453
    %s1456 = sld [smem:[#allocation7 + $0x27]]
    %v1457 = vstv %s1456
    %1458 = vrot.lane.b32.xlu0 %v464, 95
    %v1459 = vpop.permute.xlu0 %1458
    %v1460 = vrot.slane %v1459, 2
    %v1461 = vrot.slane %v1459, 4
    %vm1462 = vcmask 777216
    %v1463 = vsel %vm1462, %v1460, %v1461
    %v1465 = vmul.f32 %v1457, %v1463
    %1467 = vrot.lane.b32.xlu0 %v1465, 81
    %v1468 = vpop.permute.xlu0 %1467
    %v1469 = vrot.slane %v1468, 6
    %v1470 = vsel %vm1061, %v1469, %v1468
    %v1472 = vadd.f32 %v1455, %v1470
    %s1473 = sld [smem:[#allocation7 + $0x58]]
    %v1474 = vstv %s1473
    %1475 = vrot.lane.b32.xlu0 %v465, 95
    %v1476 = vpop.permute.xlu0 %1475
    %v1477 = vrot.slane %v1476, 2
    %v1478 = vrot.slane %v1476, 4
    %v1479 = vsel %vm1462, %v1477, %v1478
    %v1481 = vmul.f32 %v1474, %v1479
    %1483 = vrot.lane.b32.xlu0 %v1481, 81
    %v1484 = vpop.permute.xlu0 %1483
    %v1485 = vrot.slane %v1484, 6
    %v1486 = vsel %vm1061, %v1485, %v1484
    %v1488 = vadd.f32 %v1472, %v1486
    %s1489 = sld [smem:[#allocation7 + $0x2e]]
    %v1490 = vstv %s1489
    %1491 = vrot.lane.b32.xlu0 %v464, 79
    %v1492 = vpop.permute.xlu0 %1491
    %v1493 = vrot.slane %v1492, 2
    %v1494 = vrot.slane %v1492, 4
    %v1495 = vsel %vm1002, %v1493, %v1494
    %v1497 = vmul.f32 %v1490, %v1495
    %1499 = vrot.lane.b32.xlu0 %v1497, 81
    %v1500 = vpop.permute.xlu0 %1499
    %v1501 = vrot.slane %v1500, 6
    %v1502 = vsel %vm1061, %v1501, %v1500
    %v1504 = vadd.f32 %v1488, %v1502
    %s1505 = sld [smem:[#allocation7 + $0x5f]]
    %v1506 = vstv %s1505
    %1507 = vrot.lane.b32.xlu0 %v465, 79
    %v1508 = vpop.permute.xlu0 %1507
    %v1509 = vrot.slane %v1508, 2
    %v1510 = vrot.slane %v1508, 4
    %v1511 = vsel %vm1002, %v1509, %v1510
    %v1513 = vmul.f32 %v1506, %v1511
    %1515 = vrot.lane.b32.xlu0 %v1513, 81
    %v1516 = vpop.permute.xlu0 %1515
    %v1517 = vrot.slane %v1516, 6
    %v1518 = vsel %vm1061, %v1517, %v1516
    %v1520 = vadd.f32 %v1504, %v1518
    %v1521 = vadd.s32 %v489, 1
    %v1522 = vadd.s32 %v490, 1
    %vm1523 = vcmp.ge.s32.totalorder %v1521, 0
    %vm1524 = vcmp.ge.s32.totalorder %v1522, 0
    %vm1525 = vcmp.lt.s32.totalorder %v1521, 16
    %vm1526 = vcmp.lt.s32.totalorder %v1522, 16
    %vm1527 = vmand %vm1523, %vm1525
    %vm1528 = vmand %vm1524, %vm1526
    %v1529 = vsel %vm1527, 1, 0
    %v1530 = vsel %vm1528, 1, 0
    %vm1531 = vcmp.eq.s32.totalorder %v1529, 1
    %vm1532 = vcmp.eq.s32.totalorder %v1530, 1
    %v1534 = vcombine.high %v1520, %v1520
    %v1536 = vunpack.c.l.s4 1983009808
    %v1537 = vunpack.c.0.s8 %v1536
    %v1538 = vlaneseq
    %v1539 = vshrl.u32 %v1538, 7
    %v1540 = vsub.s32 %v1537, %v1539
    %v1541 = vrot.slane %v1520, %v1540
    %v1543 = vunpack.c.l.s4 1983009808
    %v1544 = vunpack.c.0.s8 %v1543
    %v1545 = vlaneseq
    %v1546 = vshrl.u32 %v1545, 7
    %v1547 = vsub.s32 %v1544, %v1546
    %v1548 = vrot.slane %v1534, %v1547
    %v1549 = vcombine.high %v1541, %v1541
    %1550 = vrot.lane.b32.xlu0 %v1541, 47
    %v1551 = vpop.permute.xlu0 %1550
    %1552 = vrot.lane.b32.xlu0 %v1549, 47
    %v1553 = vpop.permute.xlu0 %1552
    %1554 = vrot.lane.b32.xlu0 %v1548, 47
    %v1555 = vpop.permute.xlu0 %1554
    %vm1556 = vcmask 384000
    %v1557 = vsel %vm1556, %v1551, %v1553
    %v1558 = vsel %vm1556, %v1553, %v1555
    %v1561 = vsel %vm1531, %v1557, 0.0
    %v1562 = vsel %vm1532, %v1558, 0.0
    %v1563 = vadd.f32 %v1340, %v1561
    %v1564 = vadd.f32 %v1341, %v1562
    %s1565 = sld [smem:[#allocation7 + $0x5]]
    %v1566 = vstv %s1565
    %v1567 = vmul.f32 %v1566, %v464
    %v1568 = vadd.f32 %v1567, 0.0
    %s1569 = sld [smem:[#allocation7 + $0x36]]
    %v1570 = vstv %s1569
    %v1571 = vmul.f32 %v1570, %v465
    %v1572 = vadd.f32 %v1568, %v1571
    %s1573 = sld [smem:[#allocation7 + $0xc]]
    %v1574 = vstv %s1573
    %v1575 = vmul.f32 %v1574, %v464
    %1577 = vrot.lane.b32.xlu0 %v1575, 112
    %v1578 = vpop.permute.xlu0 %1577
    %v1579 = vrot.slane %v1578, 2
    %v1580 = vsel %vm506, %v1578, %v1579
    %v1582 = vadd.f32 %v1572, %v1580
    %s1583 = sld [smem:[#allocation7 + $0x3d]]
    %v1584 = vstv %s1583
    %v1585 = vmul.f32 %v1584, %v465
    %1587 = vrot.lane.b32.xlu0 %v1585, 112
    %v1588 = vpop.permute.xlu0 %1587
    %v1589 = vrot.slane %v1588, 2
    %v1590 = vsel %vm506, %v1588, %v1589
    %v1592 = vadd.f32 %v1582, %v1590
    %s1593 = sld [smem:[#allocation7 + $0x13]]
    %v1594 = vstv %s1593
    %v1595 = vmul.f32 %v1594, %v464
    %1597 = vrot.lane.b32.xlu0 %v1595, 96
    %v1598 = vpop.permute.xlu0 %1597
    %v1599 = vrot.slane %v1598, 2
    %v1600 = vsel %vm527, %v1598, %v1599
    %v1602 = vadd.f32 %v1592, %v1600
    %s1603 = sld [smem:[#allocation7 + $0x44]]
    %v1604 = vstv %s1603
    %v1605 = vmul.f32 %v1604, %v465
    %1607 = vrot.lane.b32.xlu0 %v1605, 96
    %v1608 = vpop.permute.xlu0 %1607
    %v1609 = vrot.slane %v1608, 2
    %v1610 = vsel %vm527, %v1608, %v1609
    %v1612 = vadd.f32 %v1602, %v1610
    %s1613 = sld [smem:[#allocation7 + $0x1a]]
    %v1614 = vstv %s1613
    %1615 = vrot.lane.b32.xlu0 %v464, 126
    %v1616 = vpop.permute.xlu0 %1615
    %v1617 = vrot.slane %v1616, 2
    %v1618 = vrot.slane %v1616, 4
    %vm1619 = vcmask 1031168
    %v1620 = vsel %vm1619, %v1617, %v1618
    %v1622 = vmul.f32 %v1614, %v1620
    %1624 = vrot.lane.b32.xlu0 %v1622, 82
    %v1625 = vpop.permute.xlu0 %1624
    %v1626 = vrot.slane %v1625, 6
    %v1627 = vsel %vm849, %v1626, %v1625
    %v1629 = vadd.f32 %v1612, %v1627
    %s1630 = sld [smem:[#allocation7 + $0x4b]]
    %v1631 = vstv %s1630
    %1632 = vrot.lane.b32.xlu0 %v465, 126
    %v1633 = vpop.permute.xlu0 %1632
    %v1634 = vrot.slane %v1633, 2
    %v1635 = vrot.slane %v1633, 4
    %v1636 = vsel %vm1619, %v1634, %v1635
    %v1638 = vmul.f32 %v1631, %v1636
    %1640 = vrot.lane.b32.xlu0 %v1638, 82
    %v1641 = vpop.permute.xlu0 %1640
    %v1642 = vrot.slane %v1641, 6
    %v1643 = vsel %vm849, %v1642, %v1641
    %v1645 = vadd.f32 %v1629, %v1643
    %s1646 = sld [smem:[#allocation7 + $0x21]]
    %v1647 = vstv %s1646
    %1648 = vrot.lane.b32.xlu0 %v464, 110
    %v1649 = vpop.permute.xlu0 %1648
    %v1650 = vrot.slane %v1649, 2
    %v1651 = vrot.slane %v1649, 4
    %vm1652 = vcmask 900096
    %v1653 = vsel %vm1652, %v1650, %v1651
    %v1655 = vmul.f32 %v1647, %v1653
    %1657 = vrot.lane.b32.xlu0 %v1655, 82
    %v1658 = vpop.permute.xlu0 %1657
    %v1659 = vrot.slane %v1658, 6
    %v1660 = vsel %vm849, %v1659, %v1658
    %v1662 = vadd.f32 %v1645, %v1660
    %s1663 = sld [smem:[#allocation7 + $0x52]]
    %v1664 = vstv %s1663
    %1665 = vrot.lane.b32.xlu0 %v465, 110
    %v1666 = vpop.permute.xlu0 %1665
    %v1667 = vrot.slane %v1666, 2
    %v1668 = vrot.slane %v1666, 4
    %v1669 = vsel %vm1652, %v1667, %v1668
    %v1671 = vmul.f32 %v1664, %v1669
    %1673 = vrot.lane.b32.xlu0 %v1671, 82
    %v1674 = vpop.permute.xlu0 %1673
    %v1675 = vrot.slane %v1674, 6
    %v1676 = vsel %vm849, %v1675, %v1674
    %v1678 = vadd.f32 %v1662, %v1676
    %s1679 = sld [smem:[#allocation7 + $0x28]]
    %v1680 = vstv %s1679
    %1681 = vrot.lane.b32.xlu0 %v464, 94
    %v1682 = vpop.permute.xlu0 %1681
    %v1683 = vrot.slane %v1682, 2
    %v1684 = vrot.slane %v1682, 4
    %vm1685 = vcmask 769024
    %v1686 = vsel %vm1685, %v1683, %v1684
    %v1688 = vmul.f32 %v1680, %v1686
    %1690 = vrot.lane.b32.xlu0 %v1688, 82
    %v1691 = vpop.permute.xlu0 %1690
    %v1692 = vrot.slane %v1691, 6
    %v1693 = vsel %vm849, %v1692, %v1691
    %v1695 = vadd.f32 %v1678, %v1693
    %s1696 = sld [smem:[#allocation7 + $0x59]]
    %v1697 = vstv %s1696
    %1698 = vrot.lane.b32.xlu0 %v465, 94
    %v1699 = vpop.permute.xlu0 %1698
    %v1700 = vrot.slane %v1699, 2
    %v1701 = vrot.slane %v1699, 4
    %v1702 = vsel %vm1685, %v1700, %v1701
    %v1704 = vmul.f32 %v1697, %v1702
    %1706 = vrot.lane.b32.xlu0 %v1704, 82
    %v1707 = vpop.permute.xlu0 %1706
    %v1708 = vrot.slane %v1707, 6
    %v1709 = vsel %vm849, %v1708, %v1707
    %v1711 = vadd.f32 %v1695, %v1709
    %s1712 = sld [smem:[#allocation7 + $0x2f]]
    %v1713 = vstv %s1712
    %1714 = vrot.lane.b32.xlu0 %v464, 78
    %v1715 = vpop.permute.xlu0 %1714
    %v1716 = vrot.slane %v1715, 2
    %v1717 = vrot.slane %v1715, 4
    %v1718 = vsel %vm790, %v1716, %v1717
    %v1720 = vmul.f32 %v1713, %v1718
    %1722 = vrot.lane.b32.xlu0 %v1720, 82
    %v1723 = vpop.permute.xlu0 %1722
    %v1724 = vrot.slane %v1723, 6
    %v1725 = vsel %vm849, %v1724, %v1723
    %v1727 = vadd.f32 %v1711, %v1725
    %s1728 = sld [smem:[#allocation7 + $0x60]]
    %v1729 = vstv %s1728
    %1730 = vrot.lane.b32.xlu0 %v465, 78
    %v1731 = vpop.permute.xlu0 %1730
    %v1732 = vrot.slane %v1731, 2
    %v1733 = vrot.slane %v1731, 4
    %v1734 = vsel %vm790, %v1732, %v1733
    %v1736 = vmul.f32 %v1729, %v1734
    %1738 = vrot.lane.b32.xlu0 %v1736, 82
    %v1739 = vpop.permute.xlu0 %1738
    %v1740 = vrot.slane %v1739, 6
    %v1741 = vsel %vm849, %v1740, %v1739
    %v1743 = vadd.f32 %v1727, %v1741
    %v1744 = vadd.s32 %v489, 2
    %v1745 = vadd.s32 %v490, 2
    %vm1746 = vcmp.ge.s32.totalorder %v1744, 0
    %vm1747 = vcmp.ge.s32.totalorder %v1745, 0
    %vm1748 = vcmp.lt.s32.totalorder %v1744, 16
    %vm1749 = vcmp.lt.s32.totalorder %v1745, 16
    %vm1750 = vmand %vm1746, %vm1748
    %vm1751 = vmand %vm1747, %vm1749
    %v1752 = vsel %vm1750, 1, 0
    %v1753 = vsel %vm1751, 1, 0
    %vm1754 = vcmp.eq.s32.totalorder %v1752, 1
    %vm1755 = vcmp.eq.s32.totalorder %v1753, 1
    %v1757 = vcombine.high %v1743, %v1743
    %v1759 = vunpack.c.l.s4 1983009808
    %v1760 = vunpack.c.0.s8 %v1759
    %v1761 = vlaneseq
    %v1762 = vshrl.u32 %v1761, 7
    %v1763 = vsub.s32 %v1760, %v1762
    %v1764 = vrot.slane %v1743, %v1763
    %v1766 = vunpack.c.l.s4 1983009808
    %v1767 = vunpack.c.0.s8 %v1766
    %v1768 = vlaneseq
    %v1769 = vshrl.u32 %v1768, 7
    %v1770 = vsub.s32 %v1767, %v1769
    %v1771 = vrot.slane %v1757, %v1770
    %v1772 = vcombine.high %v1764, %v1764
    %1773 = vrot.lane.b32.xlu0 %v1764, 46
    %v1774 = vpop.permute.xlu0 %1773
    %1775 = vrot.lane.b32.xlu0 %v1772, 46
    %v1776 = vpop.permute.xlu0 %1775
    %1777 = vrot.lane.b32.xlu0 %v1771, 46
    %v1778 = vpop.permute.xlu0 %1777
    %vm1779 = vcmask 375808
    %v1780 = vsel %vm1779, %v1774, %v1776
    %v1781 = vsel %vm1779, %v1776, %v1778
    %v1784 = vsel %vm1754, %v1780, 0.0
    %v1785 = vsel %vm1755, %v1781, 0.0
    %v1786 = vadd.f32 %v1563, %v1784
    %v1787 = vadd.f32 %v1564, %v1785
    %s1788 = sld [smem:[#allocation7 + $0x6]]
    %v1789 = vstv %s1788
    %v1790 = vmul.f32 %v1789, %v464
    %v1791 = vadd.f32 %v1790, 0.0
    %s1792 = sld [smem:[#allocation7 + $0x37]]
    %v1793 = vstv %s1792
    %v1794 = vmul.f32 %v1793, %v465
    %v1795 = vadd.f32 %v1791, %v1794
    %s1796 = sld [smem:[#allocation7 + $0xd]]
    %v1797 = vstv %s1796
    %v1798 = vmul.f32 %v1797, %v464
    %1800 = vrot.lane.b32.xlu0 %v1798, 112
    %v1801 = vpop.permute.xlu0 %1800
    %v1802 = vrot.slane %v1801, 2
    %v1803 = vsel %vm506, %v1801, %v1802
    %v1805 = vadd.f32 %v1795, %v1803
    %s1806 = sld [smem:[#allocation7 + $0x3e]]
    %v1807 = vstv %s1806
    %v1808 = vmul.f32 %v1807, %v465
    %1810 = vrot.lane.b32.xlu0 %v1808, 112
    %v1811 = vpop.permute.xlu0 %1810
    %v1812 = vrot.slane %v1811, 2
    %v1813 = vsel %vm506, %v1811, %v1812
    %v1815 = vadd.f32 %v1805, %v1813
    %s1816 = sld [smem:[#allocation7 + $0x14]]
    %v1817 = vstv %s1816
    %v1818 = vmul.f32 %v1817, %v464
    %1820 = vrot.lane.b32.xlu0 %v1818, 96
    %v1821 = vpop.permute.xlu0 %1820
    %v1822 = vrot.slane %v1821, 2
    %v1823 = vsel %vm527, %v1821, %v1822
    %v1825 = vadd.f32 %v1815, %v1823
    %s1826 = sld [smem:[#allocation7 + $0x45]]
    %v1827 = vstv %s1826
    %v1828 = vmul.f32 %v1827, %v465
    %1830 = vrot.lane.b32.xlu0 %v1828, 96
    %v1831 = vpop.permute.xlu0 %1830
    %v1832 = vrot.slane %v1831, 2
    %v1833 = vsel %vm527, %v1831, %v1832
    %v1835 = vadd.f32 %v1825, %v1833
    %s1836 = sld [smem:[#allocation7 + $0x1b]]
    %v1837 = vstv %s1836
    %1838 = vrot.lane.b32.xlu0 %v464, 125
    %v1839 = vpop.permute.xlu0 %1838
    %v1840 = vrot.slane %v1839, 2
    %v1841 = vrot.slane %v1839, 4
    %vm1842 = vcmask 1022976
    %v1843 = vsel %vm1842, %v1840, %v1841
    %v1845 = vmul.f32 %v1837, %v1843
    %1847 = vrot.lane.b32.xlu0 %v1845, 83
    %v1848 = vpop.permute.xlu0 %1847
    %v1849 = vrot.slane %v1848, 6
    %v1850 = vsel %vm637, %v1849, %v1848
    %v1852 = vadd.f32 %v1835, %v1850
    %s1853 = sld [smem:[#allocation7 + $0x4c]]
    %v1854 = vstv %s1853
    %1855 = vrot.lane.b32.xlu0 %v465, 125
    %v1856 = vpop.permute.xlu0 %1855
    %v1857 = vrot.slane %v1856, 2
    %v1858 = vrot.slane %v1856, 4
    %v1859 = vsel %vm1842, %v1857, %v1858
    %v1861 = vmul.f32 %v1854, %v1859
    %1863 = vrot.lane.b32.xlu0 %v1861, 83
    %v1864 = vpop.permute.xlu0 %1863
    %v1865 = vrot.slane %v1864, 6
    %v1866 = vsel %vm637, %v1865, %v1864
    %v1868 = vadd.f32 %v1852, %v1866
    %s1869 = sld [smem:[#allocation7 + $0x22]]
    %v1870 = vstv %s1869
    %1871 = vrot.lane.b32.xlu0 %v464, 109
    %v1872 = vpop.permute.xlu0 %1871
    %v1873 = vrot.slane %v1872, 2
    %v1874 = vrot.slane %v1872, 4
    %vm1875 = vcmask 891904
    %v1876 = vsel %vm1875, %v1873, %v1874
    %v1878 = vmul.f32 %v1870, %v1876
    %1880 = vrot.lane.b32.xlu0 %v1878, 83
    %v1881 = vpop.permute.xlu0 %1880
    %v1882 = vrot.slane %v1881, 6
    %v1883 = vsel %vm637, %v1882, %v1881
    %v1885 = vadd.f32 %v1868, %v1883
    %s1886 = sld [smem:[#allocation7 + $0x53]]
    %v1887 = vstv %s1886
    %1888 = vrot.lane.b32.xlu0 %v465, 109
    %v1889 = vpop.permute.xlu0 %1888
    %v1890 = vrot.slane %v1889, 2
    %v1891 = vrot.slane %v1889, 4
    %v1892 = vsel %vm1875, %v1890, %v1891
    %v1894 = vmul.f32 %v1887, %v1892
    %1896 = vrot.lane.b32.xlu0 %v1894, 83
    %v1897 = vpop.permute.xlu0 %1896
    %v1898 = vrot.slane %v1897, 6
    %v1899 = vsel %vm637, %v1898, %v1897
    %v1901 = vadd.f32 %v1885, %v1899
    %s1902 = sld [smem:[#allocation7 + $0x29]]
    %v1903 = vstv %s1902
    %1904 = vrot.lane.b32.xlu0 %v464, 93
    %v1905 = vpop.permute.xlu0 %1904
    %v1906 = vrot.slane %v1905, 2
    %v1907 = vrot.slane %v1905, 4
    %vm1908 = vcmask 760832
    %v1909 = vsel %vm1908, %v1906, %v1907
    %v1911 = vmul.f32 %v1903, %v1909
    %1913 = vrot.lane.b32.xlu0 %v1911, 83
    %v1914 = vpop.permute.xlu0 %1913
    %v1915 = vrot.slane %v1914, 6
    %v1916 = vsel %vm637, %v1915, %v1914
    %v1918 = vadd.f32 %v1901, %v1916
    %s1919 = sld [smem:[#allocation7 + $0x5a]]
    %v1920 = vstv %s1919
    %1921 = vrot.lane.b32.xlu0 %v465, 93
    %v1922 = vpop.permute.xlu0 %1921
    %v1923 = vrot.slane %v1922, 2
    %v1924 = vrot.slane %v1922, 4
    %v1925 = vsel %vm1908, %v1923, %v1924
    %v1927 = vmul.f32 %v1920, %v1925
    %1929 = vrot.lane.b32.xlu0 %v1927, 83
    %v1930 = vpop.permute.xlu0 %1929
    %v1931 = vrot.slane %v1930, 6
    %v1932 = vsel %vm637, %v1931, %v1930
    %v1934 = vadd.f32 %v1918, %v1932
    %s1935 = sld [smem:[#allocation7 + $0x30]]
    %v1936 = vstv %s1935
    %1937 = vrot.lane.b32.xlu0 %v464, 77
    %v1938 = vpop.permute.xlu0 %1937
    %v1939 = vrot.slane %v1938, 2
    %v1940 = vrot.slane %v1938, 4
    %v1941 = vsel %vm577, %v1939, %v1940
    %v1943 = vmul.f32 %v1936, %v1941
    %1945 = vrot.lane.b32.xlu0 %v1943, 83
    %v1946 = vpop.permute.xlu0 %1945
    %v1947 = vrot.slane %v1946, 6
    %v1948 = vsel %vm637, %v1947, %v1946
    %v1950 = vadd.f32 %v1934, %v1948
    %s1951 = sld [smem:[#allocation7 + $0x61]]
    %v1952 = vstv %s1951
    %1953 = vrot.lane.b32.xlu0 %v465, 77
    %v1954 = vpop.permute.xlu0 %1953
    %v1955 = vrot.slane %v1954, 2
    %v1956 = vrot.slane %v1954, 4
    %v1957 = vsel %vm577, %v1955, %v1956
    %v1959 = vmul.f32 %v1952, %v1957
    %1961 = vrot.lane.b32.xlu0 %v1959, 83
    %v1962 = vpop.permute.xlu0 %1961
    %v1963 = vrot.slane %v1962, 6
    %v1964 = vsel %vm637, %v1963, %v1962
    %v1966 = vadd.f32 %v1950, %v1964
    %v1967 = vadd.s32 %v489, 3
    %v1968 = vadd.s32 %v490, 3
    %vm1969 = vcmp.ge.s32.totalorder %v1967, 0
    %vm1970 = vcmp.ge.s32.totalorder %v1968, 0
    %vm1971 = vcmp.lt.s32.totalorder %v1967, 16
    %vm1972 = vcmp.lt.s32.totalorder %v1968, 16
    %vm1973 = vmand %vm1969, %vm1971
    %vm1974 = vmand %vm1970, %vm1972
    %v1975 = vsel %vm1973, 1, 0
    %v1976 = vsel %vm1974, 1, 0
    %vm1977 = vcmp.eq.s32.totalorder %v1975, 1
    %vm1978 = vcmp.eq.s32.totalorder %v1976, 1
    %v1980 = vcombine.high %v1966, %v1966
    %v1982 = vunpack.c.l.s4 1983009808
    %v1983 = vunpack.c.0.s8 %v1982
    %v1984 = vlaneseq
    %v1985 = vshrl.u32 %v1984, 7
    %v1986 = vsub.s32 %v1983, %v1985
    %v1987 = vrot.slane %v1966, %v1986
    %v1989 = vunpack.c.l.s4 1983009808
    %v1990 = vunpack.c.0.s8 %v1989
    %v1991 = vlaneseq
    %v1992 = vshrl.u32 %v1991, 7
    %v1993 = vsub.s32 %v1990, %v1992
    %v1994 = vrot.slane %v1980, %v1993
    %v1995 = vcombine.high %v1987, %v1987
    %1996 = vrot.lane.b32.xlu0 %v1987, 45
    %v1997 = vpop.permute.xlu0 %1996
    %1998 = vrot.lane.b32.xlu0 %v1995, 45
    %v1999 = vpop.permute.xlu0 %1998
    %2000 = vrot.lane.b32.xlu0 %v1994, 45
    %v2001 = vpop.permute.xlu0 %2000
    %vm2002 = vcmask 367616
    %v2003 = vsel %vm2002, %v1997, %v1999
    %v2004 = vsel %vm2002, %v1999, %v2001
    %v2007 = vsel %vm1977, %v2003, 0.0
    %v2008 = vsel %vm1978, %v2004, 0.0
    %v2009 = vadd.f32 %v1786, %v2007
    %v2010 = vadd.f32 %v1787, %v2008
    %v2011 = vxor.u32 %v2009, 2147483648
    %v2012 = vxor.u32 %v2010, 2147483648
    %v2013 = vmul.f32 %v2011, 1.442695
    %v2014 = vpow.pop %v2013
    %v2015 = vmul.f32 %v2012, 1.442695
    %v2016 = vpow.pop %v2015
    %v2017 = vadd.f32 %v2014, 1.0
    %v2018 = vadd.f32 %v2016, 1.0
    %v2019 = vrcp.pop %v2017
    %v2020 = vmul.f32 1.0, %v2019
    %v2021 = vrcp.pop %v2018
    %v2022 = vmul.f32 1.0, %v2021
    %v2025 = vcombine.low %v2020, %v2022
    %v2027 = vunpack.c.l.s4 1966171168
    %v2028 = vunpack.c.0.s8 %v2027
    %v2029 = vlaneseq
    %v2030 = vshrl.u32 %v2029, 7
    %v2031 = vsub.s32 %v2028, %v2030
    %v2032 = vrot.slane %v2025, %v2031
    %v2033 = vcombine.high %v2032, %v2032
    %v2035 = vunpack.c.l.s4 1966171168
    %v2036 = vunpack.c.0.s8 %v2035
    %v2037 = vlaneseq
    %v2038 = vshrl.u32 %v2037, 7
    %v2039 = vsub.s32 %v2036, %v2038
    %v2040 = vrot.slane %v2032, %v2039
    %v2042 = vunpack.c.l.s4 1966171168
    %v2043 = vunpack.c.0.s8 %v2042
    %v2044 = vlaneseq
    %v2045 = vshrl.u32 %v2044, 7
    %v2046 = vsub.s32 %v2043, %v2045
    %v2047 = vrot.slane %v2033, %v2046
    %v2048 = vlaneseq
    %v2049 = vshrl.u32 %v2048, 7
    %v2050 = vsub.s32 0, %v2049
    %v2051 = vrot.slane %v2040, %v2050
    %v2052 = vlaneseq
    %v2053 = vshrl.u32 %v2052, 7
    %v2054 = vsub.s32 1, %v2053
    %v2055 = vrot.slane %v2040, %v2054
    %v2056 = vlaneseq
    %v2057 = vshrl.u32 %v2056, 7
    %v2058 = vsub.s32 0, %v2057
    %v2059 = vrot.slane %v2047, %v2058
    %v2060 = vlaneseq
    %v2061 = vshrl.u32 %v2060, 7
    %v2062 = vsub.s32 1, %v2061
    %v2063 = vrot.slane %v2047, %v2062
    %v2068 = vmul.f32 %v344, %v2051
    %v2069 = vmul.f32 %v345, %v2055
    %v2070 = vmul.f32 %v346, %v2051
    %v2071 = vmul.f32 %v347, %v2055
    %v2072 = vmul.f32 %v348, %v2059
    %v2073 = vmul.f32 %v349, %v2063
    %v2074 = vmul.f32 %v350, %v2059
    %v2075 = vmul.f32 %v351, %v2063
    %2076 = vst [vmem:[#allocation8] sm:$0xff] %v2068
    %2077 = vst [vmem:[#allocation8 + $0x8] sm:$0xff] %v2069
    %2078 = vst [vmem:[#allocation8 + $0x10] sm:$0xff] %v2070
    %2079 = vst [vmem:[#allocation8 + $0x18] sm:$0xff] %v2071
    %2080 = vst [vmem:[#allocation8 + $0x20] sm:$0xff] %v2072
    %2081 = vst [vmem:[#allocation8 + $0x28] sm:$0xff] %v2073
    %2082 = vst [vmem:[#allocation8 + $0x30] sm:$0xff] %v2074
    %2083 = vst [vmem:[#allocation8 + $0x38] sm:$0xff] %v2075
    // Predicated region
    $region34: #{tpu_custom_call.1} parent=1 // pred_check
      _
    $region35: #{tpu_custom_call.1} parent=1 // pred_check_branch
      %2085 = sbr.rel (0) target = $region37
    $region36: #{tpu_custom_call.1} parent=1 // pred_region
      %s2087 = ssub.s32 1024, 1024
      %2088 = vsyncadd [#allocation5], %s2087
      %s2089 = sshll.u32 [#allocation8], 4
      %s2090 = int_to_ptr.vmem [resolvable:$true] %s2089
      %2095 = dma.vmem_to_hbm [thread:$0]  %s2090, 1024, %s6, [#allocation5], 256, 256, 16
    $region37: #{tpu_custom_call.1} parent=1 // pred_fallthru
      _
    // Predicated region
    $region38: #{tpu_custom_call.1} parent=1 // pred_check
      _
    $region39: #{tpu_custom_call.1} parent=1 // pred_check_branch
      %2097 = sbr.rel (0) target = $region41
    $region40: #{tpu_custom_call.1} parent=1 // pred_region
      %2098 = dma.done [#allocation5], 1024
    $region41: #{tpu_custom_call.1} parent=1 // pred_fallthru
      _
    %2099 = vsyncpa [#allocation4], 1
    %2100 = vsyncpa [#allocation5], 1
    %2101 = vsyncpa [#allocation6], 1

</llo_original>
